<compile_context>
chip_gen: v7x
topology: tpu7x:2x2x1
jax: 0.10.0
libtpu: 0.0.40
codegen_flags: <defaults>
</compile_context>

<pallas_src>
import functools

import jax
import jax.numpy as jnp
from jax import lax
from jax.experimental import pallas as pl
from jax.experimental.pallas import tpu as pltpu


def _gru_stack_kernel(x_ref, w_l0_ref, w_ih_ref, w_hh_ref, b_gi_ref, b_hn_ref,
                      h_out_ref, gi_buf, seq_buf,
                      *, seq_len, bt, hidden, unroll):
    """Grid = (batch_tiles [parallel], layers [arbitrary]); one GRU layer per step.

    Scratch (persistent across the inner layer axis, per batch tile / per core):
      gi_buf  (S, BT, 3H): per-timestep input-to-hidden gate terms (+ folded biases)
      seq_buf (S, BT,  H): current layer's output sequence -> next layer's input
    """
    H = hidden
    layer = pl.program_id(1)

    # Layer 0: input feature dim is 1 -> gate inputs are a VPU broadcast-multiply
    # of the (1, 3H) weight row against the raw (BT, S) x block.  Computed once,
    # off the serial critical path; replaces the old gi0 HBM round trip.
    @pl.when(layer == 0)
    def _():
        xt = x_ref[...].T                                   # (S, BT), tiny transpose
        gi_buf[...] = (xt[:, :, None] * w_l0_ref[...][None, :, :]
                       + b_gi_ref[...][None, :, :])         # (S, BT, 3H)

    # Layers > 0: hoist the input-to-hidden matmul out of the time loop —
    # ONE big MXU matmul over ALL timesteps of the previous layer's output.
    @pl.when(layer > 0)
    def _():
        prev = seq_buf[...].reshape(seq_len * bt, H)
        gi = jnp.dot(prev, w_ih_ref[...], preferred_element_type=jnp.float32)
        gi = gi + b_gi_ref[...]                             # (1, 3H) broadcast, once
        gi_buf[...] = gi.reshape(seq_len, bt, 3 * H)

    # Loop invariants hoisted above the recurrence (broadcast once, not per
    # unrolled iteration — JAX does not CSE broadcast_in_dim).
    w_hh = w_hh_ref[...]                                    # (H, 3H)  r | z | n
    b_hn = jnp.broadcast_to(b_hn_ref[...], (bt, H))

    def step(t, h):
        gi = gi_buf[t]                                      # (BT, 3H)
        gh = jnp.dot(h, w_hh, preferred_element_type=jnp.float32)   # one MXU push
        rz = jax.nn.sigmoid(gi[:, :2 * H] + gh[:, :2 * H])  # fused r|z gates
        r = rz[:, :H]
        z = rz[:, H:]
        n = jnp.tanh(gi[:, 2 * H:] + r * (gh[:, 2 * H:] + b_hn))
        h_new = n + z * (h - n)                             # == (1-z)*n + z*h
        seq_buf[t] = h_new                                  # feeds next layer
        return h_new

    h0 = jnp.zeros((bt, H), jnp.float32)
    h_final = lax.fori_loop(0, seq_len, step, h0, unroll=unroll)
    h_out_ref[...] = h_final


def init_raw_params(key, hidden_size, num_layers, input_size=1):
    """PyTorch-style GRU init: U(-1/sqrt(H), 1/sqrt(H)), raw (3H, in) layout."""
    H = hidden_size
    bound = 1.0 / float(H) ** 0.5
    layers = []
    for layer in range(num_layers):
        in_dim = input_size if layer == 0 else H
        key, k1, k2, k3, k4 = jax.random.split(key, 5)
        layers.append(dict(
            weight_ih=jax.random.uniform(k1, (3 * H, in_dim), jnp.float32, -bound, bound),
            weight_hh=jax.random.uniform(k2, (3 * H, H), jnp.float32, -bound, bound),
            bias_ih=jax.random.uniform(k3, (3 * H,), jnp.float32, -bound, bound),
            bias_hh=jax.random.uniform(k4, (3 * H,), jnp.float32, -bound, bound),
        ))
    return layers


def pack_params(raw_layers, hidden_size):
    """Pack raw PyTorch-layout weights into the fused kernel layout."""
    H = hidden_size

    def fuse(W):  # (3H, in) -> (in, 3H), column blocks r | z | n
        return jnp.concatenate([W[:H].T, W[H:2 * H].T, W[2 * H:].T], axis=-1)

    w_hh, b_gi, b_hn = [], [], []
    for p in raw_layers:
        bi, bh = p["bias_ih"], p["bias_hh"]
        # r/z biases from input & hidden paths fold into one term;
        # b_hn must stay inside the n-gate's r*(...) term, so keep it separate.
        b_gi.append(jnp.concatenate([bi[:H] + bh[:H],
                                     bi[H:2 * H] + bh[H:2 * H],
                                     bi[2 * H:]], axis=-1).reshape(1, 3 * H))
        b_hn.append(bh[2 * H:].reshape(1, H))
        w_hh.append(fuse(p["weight_hh"]))                   # (H, 3H)

    if len(raw_layers) > 1:                                 # no dead layer-0 slot
        w_ih = jnp.stack([fuse(p["weight_ih"]) for p in raw_layers[1:]])
    else:
        w_ih = jnp.zeros((1, H, 3 * H), jnp.float32)        # never read (1 layer)

    return dict(
        w_ih_l0=fuse(raw_layers[0]["weight_ih"]),           # (1, 3H) for input_size=1
        w_ih=w_ih, w_hh=jnp.stack(w_hh),
        b_gi=jnp.stack(b_gi), b_hn=jnp.stack(b_hn))


def _vmem_capacity_bytes():
    try:
        info = pltpu.get_tpu_info()
        cap = getattr(info, "vmem_capacity_bytes", None)
        if cap:
            return int(cap)
    except Exception:
        pass
    return 64 << 20   # conservative fallback (v7x per-core VMEM)


def _pick_batch_tile(b_pad, cap=256):
    bt = min(b_pad, cap)
    while b_pad % bt:
        bt -= 8
    return bt


def rnn_encoder_forward(x, packed, hidden_size, num_layers):
    """x: (seq_len, batch, 1) f32 -> h_n: (num_layers, batch, hidden_size)."""
    S, B, _ = x.shape
    H = hidden_size
    B_pad = ((B + 7) // 8) * 8                    # sublane-align batch tiles
    BT = _pick_batch_tile(B_pad)
    n_btiles = B_pad // BT

    # Raw input, batch-major (B_pad, S): S*B_pad*4 bytes of HBM traffic instead of
    # the old 2x S*B_pad*3H*4 gi0 round trip.  Padded rows are zero; their hidden
    # states stay bounded (sigmoid/tanh) and are sliced away at the end.
    x_bm = jnp.zeros((B_pad, S), jnp.float32).at[:B, :].set(x[:, :, 0].T)

    unroll = True if S <= 32 else 8               # full unroll only for short seqs
    kernel = functools.partial(_gru_stack_kernel, seq_len=S, bt=BT, hidden=H,
                               unroll=unroll)

    # VMEM budget: resident scratch + double-buffered blocked operands, 2x headroom,
    # capped at ~75% of this generation's physical VMEM (leaves compiler headroom on
    # v7x's 64 MiB; allows >64 MiB scratch on v5e/v6e's 128 MiB when S*B is large).
    vmem_bytes = 4 * (
        S * BT * 3 * H + S * BT * H                      # gi_buf + seq_buf
        + 2 * (BT * S + 3 * H                            # x block + w_ih_l0
               + 2 * H * 3 * H + 3 * H + H               # w_ih, w_hh, b_gi, b_hn
               + BT * H))                                # output block
    vmem_limit = int(min(max(2 * vmem_bytes, 8 << 20),
                         int(0.75 * _vmem_capacity_bytes())))

    w_ih_map = lambda b, l: (jnp.maximum(l - 1, 0), 0, 0)   # layers 1..L-1 only

    hidden_pad = pl.pallas_call(
        kernel,
        out_shape=jax.ShapeDtypeStruct((num_layers, B_pad, H), jnp.float32),
        grid_spec=pltpu.PrefetchScalarGridSpec(
            num_scalar_prefetch=0,
            grid=(n_btiles, num_layers),
            in_specs=[
                pl.BlockSpec((BT, S), lambda b, l: (b, 0)),              # raw x
                pl.BlockSpec((1, 3 * H), lambda b, l: (0, 0)),           # w_ih_l0 row
                pl.BlockSpec((None, H, 3 * H), w_ih_map),                # w_ih (l>=1)
                pl.BlockSpec((None, H, 3 * H), lambda b, l: (l, 0, 0)),  # w_hh
                pl.BlockSpec((None, 1, 3 * H), lambda b, l: (l, 0, 0)),  # b_gi
                pl.BlockSpec((None, 1, H), lambda b, l: (l, 0, 0)),      # b_hn
            ],
            out_specs=pl.BlockSpec((None, BT, H), lambda b, l: (l, b, 0)),
            scratch_shapes=[
                pltpu.VMEM((S, BT, 3 * H), jnp.float32),   # gi_buf
                pltpu.VMEM((S, BT, H), jnp.float32),       # seq_buf
            ],
        ),
        compiler_params=pltpu.CompilerParams(
            dimension_semantics=("parallel", "arbitrary"),
            vmem_limit_bytes=vmem_limit),
    )(x_bm, packed["w_ih_l0"], packed["w_ih"], packed["w_hh"],
      packed["b_gi"], packed["b_hn"])

    # nn.Dropout(p=0.2) is identity in eval/inference mode.
    return hidden_pad[:, :B, :]


def gru_reference(x, raw_layers, hidden_size, num_layers):
    """Pure-JAX reference using raw PyTorch-layout weights and exact GRU math."""
    H = hidden_size
    S, B, _ = x.shape
    inp = x
    hiddens = []
    for l in range(num_layers):
        W_ih, W_hh = raw_layers[l]["weight_ih"], raw_layers[l]["weight_hh"]
        b_ih, b_hh = raw_layers[l]["bias_ih"], raw_layers[l]["bias_hh"]
        W_ir, W_iz, W_in = W_ih[:H], W_ih[H:2 * H], W_ih[2 * H:]
        W_hr, W_hz, W_hn = W_hh[:H], W_hh[H:2 * H], W_hh[2 * H:]
        b_ir, b_iz, b_in = b_ih[:H], b_ih[H:2 * H], b_ih[2 * H:]
        b_hr, b_hz, b_hn = b_hh[:H], b_hh[H:2 * H], b_hh[2 * H:]

        def step(h, x_t, W_ir=W_ir, W_iz=W_iz, W_in=W_in,
                 W_hr=W_hr, W_hz=W_hz, W_hn=W_hn,
                 b_ir=b_ir, b_iz=b_iz, b_in=b_in,
                 b_hr=b_hr, b_hz=b_hz, b_hn=b_hn):
            r = jax.nn.sigmoid(x_t @ W_ir.T + b_ir + h @ W_hr.T + b_hr)
            z = jax.nn.sigmoid(x_t @ W_iz.T + b_iz + h @ W_hz.T + b_hz)
            n = jnp.tanh(x_t @ W_in.T + b_in + r * (h @ W_hn.T + b_hn))
            h_new = (1.0 - z) * n + z * h
            return h_new, h_new

        h0 = jnp.zeros((B, H), jnp.float32)
        h_final, outs = lax.scan(step, h0, inp)
        hiddens.append(h_final)
        inp = outs
    return jnp.stack(hiddens)


if __name__ == "__main__":
    hidden_size = 32
    num_layers = 2
    seq_len = 8
    batch = 2

    key = jax.random.PRNGKey(0)
    pkey, xkey = jax.random.split(key)
    raw = init_raw_params(pkey, hidden_size, num_layers)
    packed = pack_params(raw, hidden_size)
    x = jax.random.normal(xkey, (seq_len, batch, 1), jnp.float32)

    out = rnn_encoder_forward(x, packed, hidden_size, num_layers)
    out = jax.block_until_ready(out)

    ref = gru_reference(x, raw, hidden_size, num_layers)
    assert out.shape == (num_layers, batch, hidden_size)
    assert jnp.allclose(out, ref, atol=1e-5, rtol=1e-5), "mismatch vs JAX reference"
    print("KERNEL_OK")
</pallas_src>

<mosaic_0001>
module attributes {stable_mosaic.version = 11 : i64} {
  func.func @_gru_stack_kernel(%arg0: i32, %arg1: i32, %arg2: memref<8x8xf32, #tpu.memory_space<vmem>>, %arg3: memref<1x96xf32, #tpu.memory_space<vmem>>, %arg4: memref<1x32x96xf32, #tpu.memory_space<vmem>>, %arg5: memref<1x32x96xf32, #tpu.memory_space<vmem>>, %arg6: memref<1x1x96xf32, #tpu.memory_space<vmem>>, %arg7: memref<1x1x32xf32, #tpu.memory_space<vmem>>, %arg8: memref<1x8x32xf32, #tpu.memory_space<vmem>>, %arg9: memref<8x8x96xf32, #tpu.memory_space<vmem>>, %arg10: memref<8x8x32xf32, #tpu.memory_space<vmem>>) attributes {dimension_semantics = [#tpu.dimension_semantics<parallel>, #tpu.dimension_semantics<arbitrary>], iteration_bounds = array<i64: 1, 2>, scalar_prefetch = 0 : i64, scratch_operands = 2 : i64, tpu.core_type = #tpu.core_type<tc>, window_params = [{transform_indices = @transform_0, window_bounds = array<i64: 8, 8>}, {pipeline_mode = #tpu.pipeline_mode<synchronous>, transform_indices = @transform_1, window_bounds = array<i64: 1, 96>}, {transform_indices = @transform_2, window_bounds = array<i64: 1, 32, 96>}, {transform_indices = @transform_3, window_bounds = array<i64: 1, 32, 96>}, {transform_indices = @transform_4, window_bounds = array<i64: 1, 1, 96>}, {transform_indices = @transform_5, window_bounds = array<i64: 1, 1, 32>}, {transform_indices = @transform_6, window_bounds = array<i64: 1, 8, 32>}]} {
    %c0_i32 = arith.constant 0 : i32
    %0 = arith.cmpi eq, %arg1, %c0_i32 : i32
    %1 = arith.extui %0 : i1 to i32
    %c0_i32_0 = arith.constant 0 : i32
    %2 = arith.cmpi ne, %1, %c0_i32_0 : i32
    scf.if %2 {
      %c0_60 = arith.constant 0 : index
      %c0_61 = arith.constant 0 : index
      %232 = vector.load %arg2[%c0_60, %c0_61] : memref<8x8xf32, #tpu.memory_space<vmem>>, vector<8x8xf32>
      %233 = tpu.transpose %232, [1, 0] : vector<8x8xf32> -> vector<8x8xf32>
      %234 = vector.shape_cast %233 : vector<8x8xf32> to vector<8x8x1xf32>
      %c0_62 = arith.constant 0 : index
      %c0_63 = arith.constant 0 : index
      %235 = vector.load %arg3[%c0_62, %c0_63] : memref<1x96xf32, #tpu.memory_space<vmem>>, vector<1x96xf32>
      %236 = vector.shape_cast %235 : vector<1x96xf32> to vector<1x1x96xf32>
      %237 = vector.broadcast %234 : vector<8x8x1xf32> to vector<8x8x96xf32>
      %238 = vector.broadcast %236 : vector<1x1x96xf32> to vector<8x8x96xf32>
      %239 = arith.mulf %237, %238 : vector<8x8x96xf32>
      %c0_64 = arith.constant 0 : index
      %c0_65 = arith.constant 0 : index
      %c0_66 = arith.constant 0 : index
      %240 = vector.load %arg6[%c0_64, %c0_65, %c0_66] : memref<1x1x96xf32, #tpu.memory_space<vmem>>, vector<1x1x96xf32>
      %241 = vector.shape_cast %240 : vector<1x1x96xf32> to vector<1x96xf32>
      %242 = vector.shape_cast %241 : vector<1x96xf32> to vector<1x1x96xf32>
      %243 = vector.broadcast %242 : vector<1x1x96xf32> to vector<8x8x96xf32>
      %244 = arith.addf %239, %243 : vector<8x8x96xf32>
      %c0_67 = arith.constant 0 : index
      %c0_68 = arith.constant 0 : index
      %c0_69 = arith.constant 0 : index
      %245 = vector.load %arg9[%c0_67, %c0_68, %c0_69] : memref<8x8x96xf32, #tpu.memory_space<vmem>>, vector<8x8x96xf32>
      tpu.vector_store %arg9[%c0_67, %c0_68, %c0_69], %244 {strides = array<i32>} : memref<8x8x96xf32, #tpu.memory_space<vmem>>, vector<8x8x96xf32>,
    } else {
    }
    %c0_i32_1 = arith.constant 0 : i32
    %3 = arith.cmpi sgt, %arg1, %c0_i32_1 : i32
    %4 = arith.extui %3 : i1 to i32
    %c0_i32_2 = arith.constant 0 : i32
    %5 = arith.cmpi ne, %4, %c0_i32_2 : i32
    scf.if %5 {
      %c0_60 = arith.constant 0 : index
      %c0_61 = arith.constant 0 : index
      %c0_62 = arith.constant 0 : index
      %232 = vector.load %arg10[%c0_60, %c0_61, %c0_62] : memref<8x8x32xf32, #tpu.memory_space<vmem>>, vector<8x8x32xf32>
      %233 = vector.shape_cast %232 : vector<8x8x32xf32> to vector<64x32xf32>
      %c0_63 = arith.constant 0 : index
      %c0_64 = arith.constant 0 : index
      %c0_65 = arith.constant 0 : index
      %234 = vector.load %arg4[%c0_63, %c0_64, %c0_65] : memref<1x32x96xf32, #tpu.memory_space<vmem>>, vector<1x32x96xf32>
      %235 = vector.shape_cast %234 : vector<1x32x96xf32> to vector<32x96xf32>
      %cst_66 = arith.constant dense<0.000000e+00> : vector<64x96xf32>
      %236 = tpu.matmul %233, %235, %cst_66 {dimension_numbers = #tpu.dot_dimension_numbers<[1], [0], [0], [1], [0, 0, 1, 1], [], []>} : vector<64x32xf32>, vector<32x96xf32>, vector<64x96xf32> -> vector<64x96xf32>
      %c0_67 = arith.constant 0 : index
      %c0_68 = arith.constant 0 : index
      %c0_69 = arith.constant 0 : index
      %237 = vector.load %arg6[%c0_67, %c0_68, %c0_69] : memref<1x1x96xf32, #tpu.memory_space<vmem>>, vector<1x1x96xf32>
      %238 = vector.shape_cast %237 : vector<1x1x96xf32> to vector<1x96xf32>
      %239 = vector.broadcast %238 : vector<1x96xf32> to vector<64x96xf32>
      %240 = arith.addf %236, %239 : vector<64x96xf32>
      %241 = vector.shape_cast %240 : vector<64x96xf32> to vector<8x8x96xf32>
      %c0_70 = arith.constant 0 : index
      %c0_71 = arith.constant 0 : index
      %c0_72 = arith.constant 0 : index
      %242 = vector.load %arg9[%c0_70, %c0_71, %c0_72] : memref<8x8x96xf32, #tpu.memory_space<vmem>>, vector<8x8x96xf32>
      tpu.vector_store %arg9[%c0_70, %c0_71, %c0_72], %241 {strides = array<i32>} : memref<8x8x96xf32, #tpu.memory_space<vmem>>, vector<8x8x96xf32>,
    } else {
    }
    %c0 = arith.constant 0 : index
    %c0_3 = arith.constant 0 : index
    %c0_4 = arith.constant 0 : index
    %6 = vector.load %arg5[%c0, %c0_3, %c0_4] : memref<1x32x96xf32, #tpu.memory_space<vmem>>, vector<1x32x96xf32>
    %7 = vector.shape_cast %6 : vector<1x32x96xf32> to vector<32x96xf32>
    %c0_5 = arith.constant 0 : index
    %c0_6 = arith.constant 0 : index
    %c0_7 = arith.constant 0 : index
    %8 = vector.load %arg7[%c0_5, %c0_6, %c0_7] : memref<1x1x32xf32, #tpu.memory_space<vmem>>, vector<1x1x32xf32>
    %9 = vector.shape_cast %8 : vector<1x1x32xf32> to vector<1x32xf32>
    %10 = vector.shape_cast %9 : vector<1x32xf32> to vector<1x32xf32>
    %11 = vector.broadcast %10 : vector<1x32xf32> to vector<8x32xf32>
    %cst = arith.constant 0.000000e+00 : f32
    %12 = vector.broadcast %cst : f32 to vector<8x32xf32>
    %c0_i32_8 = arith.constant 0 : i32
    %13 = arith.index_cast %c0_i32_8 : i32 to index
    %c0_9 = arith.constant 0 : index
    %c0_10 = arith.constant 0 : index
    %14 = vector.load %arg9[%13, %c0_9, %c0_10] : memref<8x8x96xf32, #tpu.memory_space<vmem>>, vector<1x8x96xf32>
    %15 = vector.shape_cast %14 : vector<1x8x96xf32> to vector<8x96xf32>
    %cst_11 = arith.constant dense<0.000000e+00> : vector<8x96xf32>
    %16 = tpu.matmul %12, %7, %cst_11 {dimension_numbers = #tpu.dot_dimension_numbers<[1], [0], [0], [1], [0, 0, 1, 1], [], []>} : vector<8x32xf32>, vector<32x96xf32>, vector<8x96xf32> -> vector<8x96xf32>
    %17 = vector.extract_strided_slice %15 {offsets = [0, 0], sizes = [8, 64], strides = [1, 1]} : vector<8x96xf32> to vector<8x64xf32>
    %18 = vector.extract_strided_slice %16 {offsets = [0, 0], sizes = [8, 64], strides = [1, 1]} : vector<8x96xf32> to vector<8x64xf32>
    %19 = arith.addf %17, %18 : vector<8x64xf32>
    %20 = arith.negf %19 : vector<8x64xf32>
    %21 = math.exp %20 : vector<8x64xf32>
    %cst_12 = arith.constant 1.000000e+00 : f32
    %22 = vector.broadcast %cst_12 : f32 to vector<8x64xf32>
    %23 = arith.addf %22, %21 : vector<8x64xf32>
    %24 = arith.divf %22, %23 : vector<8x64xf32>
    %25 = vector.extract_strided_slice %24 {offsets = [0, 0], sizes = [8, 32], strides = [1, 1]} : vector<8x64xf32> to vector<8x32xf32>
    %26 = vector.extract_strided_slice %24 {offsets = [0, 32], sizes = [8, 32], strides = [1, 1]} : vector<8x64xf32> to vector<8x32xf32>
    %27 = vector.extract_strided_slice %15 {offsets = [0, 64], sizes = [8, 32], strides = [1, 1]} : vector<8x96xf32> to vector<8x32xf32>
    %28 = vector.extract_strided_slice %16 {offsets = [0, 64], sizes = [8, 32], strides = [1, 1]} : vector<8x96xf32> to vector<8x32xf32>
    %29 = arith.addf %28, %11 : vector<8x32xf32>
    %30 = arith.mulf %25, %29 : vector<8x32xf32>
    %31 = arith.addf %27, %30 : vector<8x32xf32>
    %32 = math.tanh %31 : vector<8x32xf32>
    %33 = arith.subf %12, %32 : vector<8x32xf32>
    %34 = arith.mulf %26, %33 : vector<8x32xf32>
    %35 = arith.addf %32, %34 : vector<8x32xf32>
    %36 = arith.index_cast %c0_i32_8 : i32 to index
    %c0_13 = arith.constant 0 : index
    %c0_14 = arith.constant 0 : index
    %37 = vector.load %arg10[%36, %c0_13, %c0_14] : memref<8x8x32xf32, #tpu.memory_space<vmem>>, vector<1x8x32xf32>
    %38 = vector.shape_cast %37 : vector<1x8x32xf32> to vector<8x32xf32>
    %39 = vector.shape_cast %35 : vector<8x32xf32> to vector<1x8x32xf32>
    tpu.vector_store %arg10[%36, %c0_13, %c0_14], %39 {strides = array<i32>} : memref<8x8x32xf32, #tpu.memory_space<vmem>>, vector<1x8x32xf32>,
    %c1_i32 = arith.constant 1 : i32
    %40 = arith.index_cast %c1_i32 : i32 to index
    %c0_15 = arith.constant 0 : index
    %c0_16 = arith.constant 0 : index
    %41 = vector.load %arg9[%40, %c0_15, %c0_16] : memref<8x8x96xf32, #tpu.memory_space<vmem>>, vector<1x8x96xf32>
    %42 = vector.shape_cast %41 : vector<1x8x96xf32> to vector<8x96xf32>
    %cst_17 = arith.constant dense<0.000000e+00> : vector<8x96xf32>
    %43 = tpu.matmul %35, %7, %cst_17 {dimension_numbers = #tpu.dot_dimension_numbers<[1], [0], [0], [1], [0, 0, 1, 1], [], []>} : vector<8x32xf32>, vector<32x96xf32>, vector<8x96xf32> -> vector<8x96xf32>
    %44 = vector.extract_strided_slice %42 {offsets = [0, 0], sizes = [8, 64], strides = [1, 1]} : vector<8x96xf32> to vector<8x64xf32>
    %45 = vector.extract_strided_slice %43 {offsets = [0, 0], sizes = [8, 64], strides = [1, 1]} : vector<8x96xf32> to vector<8x64xf32>
    %46 = arith.addf %44, %45 : vector<8x64xf32>
    %47 = arith.negf %46 : vector<8x64xf32>
    %48 = math.exp %47 : vector<8x64xf32>
    %cst_18 = arith.constant 1.000000e+00 : f32
    %49 = vector.broadcast %cst_18 : f32 to vector<8x64xf32>
    %50 = arith.addf %49, %48 : vector<8x64xf32>
    %51 = arith.divf %49, %50 : vector<8x64xf32>
    %52 = vector.extract_strided_slice %51 {offsets = [0, 0], sizes = [8, 32], strides = [1, 1]} : vector<8x64xf32> to vector<8x32xf32>
    %53 = vector.extract_strided_slice %51 {offsets = [0, 32], sizes = [8, 32], strides = [1, 1]} : vector<8x64xf32> to vector<8x32xf32>
    %54 = vector.extract_strided_slice %42 {offsets = [0, 64], sizes = [8, 32], strides = [1, 1]} : vector<8x96xf32> to vector<8x32xf32>
    %55 = vector.extract_strided_slice %43 {offsets = [0, 64], sizes = [8, 32], strides = [1, 1]} : vector<8x96xf32> to vector<8x32xf32>
    %56 = arith.addf %55, %11 : vector<8x32xf32>
    %57 = arith.mulf %52, %56 : vector<8x32xf32>
    %58 = arith.addf %54, %57 : vector<8x32xf32>
    %59 = math.tanh %58 : vector<8x32xf32>
    %60 = arith.subf %35, %59 : vector<8x32xf32>
    %61 = arith.mulf %53, %60 : vector<8x32xf32>
    %62 = arith.addf %59, %61 : vector<8x32xf32>
    %63 = arith.index_cast %c1_i32 : i32 to index
    %c0_19 = arith.constant 0 : index
    %c0_20 = arith.constant 0 : index
    %64 = vector.load %arg10[%63, %c0_19, %c0_20] : memref<8x8x32xf32, #tpu.memory_space<vmem>>, vector<1x8x32xf32>
    %65 = vector.shape_cast %64 : vector<1x8x32xf32> to vector<8x32xf32>
    %66 = vector.shape_cast %62 : vector<8x32xf32> to vector<1x8x32xf32>
    tpu.vector_store %arg10[%63, %c0_19, %c0_20], %66 {strides = array<i32>} : memref<8x8x32xf32, #tpu.memory_space<vmem>>, vector<1x8x32xf32>,
    %c2_i32 = arith.constant 2 : i32
    %67 = arith.index_cast %c2_i32 : i32 to index
    %c0_21 = arith.constant 0 : index
    %c0_22 = arith.constant 0 : index
    %68 = vector.load %arg9[%67, %c0_21, %c0_22] : memref<8x8x96xf32, #tpu.memory_space<vmem>>, vector<1x8x96xf32>
    %69 = vector.shape_cast %68 : vector<1x8x96xf32> to vector<8x96xf32>
    %cst_23 = arith.constant dense<0.000000e+00> : vector<8x96xf32>
    %70 = tpu.matmul %62, %7, %cst_23 {dimension_numbers = #tpu.dot_dimension_numbers<[1], [0], [0], [1], [0, 0, 1, 1], [], []>} : vector<8x32xf32>, vector<32x96xf32>, vector<8x96xf32> -> vector<8x96xf32>
    %71 = vector.extract_strided_slice %69 {offsets = [0, 0], sizes = [8, 64], strides = [1, 1]} : vector<8x96xf32> to vector<8x64xf32>
    %72 = vector.extract_strided_slice %70 {offsets = [0, 0], sizes = [8, 64], strides = [1, 1]} : vector<8x96xf32> to vector<8x64xf32>
    %73 = arith.addf %71, %72 : vector<8x64xf32>
    %74 = arith.negf %73 : vector<8x64xf32>
    %75 = math.exp %74 : vector<8x64xf32>
    %cst_24 = arith.constant 1.000000e+00 : f32
    %76 = vector.broadcast %cst_24 : f32 to vector<8x64xf32>
    %77 = arith.addf %76, %75 : vector<8x64xf32>
    %78 = arith.divf %76, %77 : vector<8x64xf32>
    %79 = vector.extract_strided_slice %78 {offsets = [0, 0], sizes = [8, 32], strides = [1, 1]} : vector<8x64xf32> to vector<8x32xf32>
    %80 = vector.extract_strided_slice %78 {offsets = [0, 32], sizes = [8, 32], strides = [1, 1]} : vector<8x64xf32> to vector<8x32xf32>
    %81 = vector.extract_strided_slice %69 {offsets = [0, 64], sizes = [8, 32], strides = [1, 1]} : vector<8x96xf32> to vector<8x32xf32>
    %82 = vector.extract_strided_slice %70 {offsets = [0, 64], sizes = [8, 32], strides = [1, 1]} : vector<8x96xf32> to vector<8x32xf32>
    %83 = arith.addf %82, %11 : vector<8x32xf32>
    %84 = arith.mulf %79, %83 : vector<8x32xf32>
    %85 = arith.addf %81, %84 : vector<8x32xf32>
    %86 = math.tanh %85 : vector<8x32xf32>
    %87 = arith.subf %62, %86 : vector<8x32xf32>
    %88 = arith.mulf %80, %87 : vector<8x32xf32>
    %89 = arith.addf %86, %88 : vector<8x32xf32>
    %90 = arith.index_cast %c2_i32 : i32 to index
    %c0_25 = arith.constant 0 : index
    %c0_26 = arith.constant 0 : index
    %91 = vector.load %arg10[%90, %c0_25, %c0_26] : memref<8x8x32xf32, #tpu.memory_space<vmem>>, vector<1x8x32xf32>
    %92 = vector.shape_cast %91 : vector<1x8x32xf32> to vector<8x32xf32>
    %93 = vector.shape_cast %89 : vector<8x32xf32> to vector<1x8x32xf32>
    tpu.vector_store %arg10[%90, %c0_25, %c0_26], %93 {strides = array<i32>} : memref<8x8x32xf32, #tpu.memory_space<vmem>>, vector<1x8x32xf32>,
    %c3_i32 = arith.constant 3 : i32
    %94 = arith.index_cast %c3_i32 : i32 to index
    %c0_27 = arith.constant 0 : index
    %c0_28 = arith.constant 0 : index
    %95 = vector.load %arg9[%94, %c0_27, %c0_28] : memref<8x8x96xf32, #tpu.memory_space<vmem>>, vector<1x8x96xf32>
    %96 = vector.shape_cast %95 : vector<1x8x96xf32> to vector<8x96xf32>
    %cst_29 = arith.constant dense<0.000000e+00> : vector<8x96xf32>
    %97 = tpu.matmul %89, %7, %cst_29 {dimension_numbers = #tpu.dot_dimension_numbers<[1], [0], [0], [1], [0, 0, 1, 1], [], []>} : vector<8x32xf32>, vector<32x96xf32>, vector<8x96xf32> -> vector<8x96xf32>
    %98 = vector.extract_strided_slice %96 {offsets = [0, 0], sizes = [8, 64], strides = [1, 1]} : vector<8x96xf32> to vector<8x64xf32>
    %99 = vector.extract_strided_slice %97 {offsets = [0, 0], sizes = [8, 64], strides = [1, 1]} : vector<8x96xf32> to vector<8x64xf32>
    %100 = arith.addf %98, %99 : vector<8x64xf32>
    %101 = arith.negf %100 : vector<8x64xf32>
    %102 = math.exp %101 : vector<8x64xf32>
    %cst_30 = arith.constant 1.000000e+00 : f32
    %103 = vector.broadcast %cst_30 : f32 to vector<8x64xf32>
    %104 = arith.addf %103, %102 : vector<8x64xf32>
    %105 = arith.divf %103, %104 : vector<8x64xf32>
    %106 = vector.extract_strided_slice %105 {offsets = [0, 0], sizes = [8, 32], strides = [1, 1]} : vector<8x64xf32> to vector<8x32xf32>
    %107 = vector.extract_strided_slice %105 {offsets = [0, 32], sizes = [8, 32], strides = [1, 1]} : vector<8x64xf32> to vector<8x32xf32>
    %108 = vector.extract_strided_slice %96 {offsets = [0, 64], sizes = [8, 32], strides = [1, 1]} : vector<8x96xf32> to vector<8x32xf32>
    %109 = vector.extract_strided_slice %97 {offsets = [0, 64], sizes = [8, 32], strides = [1, 1]} : vector<8x96xf32> to vector<8x32xf32>
    %110 = arith.addf %109, %11 : vector<8x32xf32>
    %111 = arith.mulf %106, %110 : vector<8x32xf32>
    %112 = arith.addf %108, %111 : vector<8x32xf32>
    %113 = math.tanh %112 : vector<8x32xf32>
    %114 = arith.subf %89, %113 : vector<8x32xf32>
    %115 = arith.mulf %107, %114 : vector<8x32xf32>
    %116 = arith.addf %113, %115 : vector<8x32xf32>
    %117 = arith.index_cast %c3_i32 : i32 to index
    %c0_31 = arith.constant 0 : index
    %c0_32 = arith.constant 0 : index
    %118 = vector.load %arg10[%117, %c0_31, %c0_32] : memref<8x8x32xf32, #tpu.memory_space<vmem>>, vector<1x8x32xf32>
    %119 = vector.shape_cast %118 : vector<1x8x32xf32> to vector<8x32xf32>
    %120 = vector.shape_cast %116 : vector<8x32xf32> to vector<1x8x32xf32>
    tpu.vector_store %arg10[%117, %c0_31, %c0_32], %120 {strides = array<i32>} : memref<8x8x32xf32, #tpu.memory_space<vmem>>, vector<1x8x32xf32>,
    %c4_i32 = arith.constant 4 : i32
    %121 = arith.index_cast %c4_i32 : i32 to index
    %c0_33 = arith.constant 0 : index
    %c0_34 = arith.constant 0 : index
    %122 = vector.load %arg9[%121, %c0_33, %c0_34] : memref<8x8x96xf32, #tpu.memory_space<vmem>>, vector<1x8x96xf32>
    %123 = vector.shape_cast %122 : vector<1x8x96xf32> to vector<8x96xf32>
    %cst_35 = arith.constant dense<0.000000e+00> : vector<8x96xf32>
    %124 = tpu.matmul %116, %7, %cst_35 {dimension_numbers = #tpu.dot_dimension_numbers<[1], [0], [0], [1], [0, 0, 1, 1], [], []>} : vector<8x32xf32>, vector<32x96xf32>, vector<8x96xf32> -> vector<8x96xf32>
    %125 = vector.extract_strided_slice %123 {offsets = [0, 0], sizes = [8, 64], strides = [1, 1]} : vector<8x96xf32> to vector<8x64xf32>
    %126 = vector.extract_strided_slice %124 {offsets = [0, 0], sizes = [8, 64], strides = [1, 1]} : vector<8x96xf32> to vector<8x64xf32>
    %127 = arith.addf %125, %126 : vector<8x64xf32>
    %128 = arith.negf %127 : vector<8x64xf32>
    %129 = math.exp %128 : vector<8x64xf32>
    %cst_36 = arith.constant 1.000000e+00 : f32
    %130 = vector.broadcast %cst_36 : f32 to vector<8x64xf32>
    %131 = arith.addf %130, %129 : vector<8x64xf32>
    %132 = arith.divf %130, %131 : vector<8x64xf32>
    %133 = vector.extract_strided_slice %132 {offsets = [0, 0], sizes = [8, 32], strides = [1, 1]} : vector<8x64xf32> to vector<8x32xf32>
    %134 = vector.extract_strided_slice %132 {offsets = [0, 32], sizes = [8, 32], strides = [1, 1]} : vector<8x64xf32> to vector<8x32xf32>
    %135 = vector.extract_strided_slice %123 {offsets = [0, 64], sizes = [8, 32], strides = [1, 1]} : vector<8x96xf32> to vector<8x32xf32>
    %136 = vector.extract_strided_slice %124 {offsets = [0, 64], sizes = [8, 32], strides = [1, 1]} : vector<8x96xf32> to vector<8x32xf32>
    %137 = arith.addf %136, %11 : vector<8x32xf32>
    %138 = arith.mulf %133, %137 : vector<8x32xf32>
    %139 = arith.addf %135, %138 : vector<8x32xf32>
    %140 = math.tanh %139 : vector<8x32xf32>
    %141 = arith.subf %116, %140 : vector<8x32xf32>
    %142 = arith.mulf %134, %141 : vector<8x32xf32>
    %143 = arith.addf %140, %142 : vector<8x32xf32>
    %144 = arith.index_cast %c4_i32 : i32 to index
    %c0_37 = arith.constant 0 : index
    %c0_38 = arith.constant 0 : index
    %145 = vector.load %arg10[%144, %c0_37, %c0_38] : memref<8x8x32xf32, #tpu.memory_space<vmem>>, vector<1x8x32xf32>
    %146 = vector.shape_cast %145 : vector<1x8x32xf32> to vector<8x32xf32>
    %147 = vector.shape_cast %143 : vector<8x32xf32> to vector<1x8x32xf32>
    tpu.vector_store %arg10[%144, %c0_37, %c0_38], %147 {strides = array<i32>} : memref<8x8x32xf32, #tpu.memory_space<vmem>>, vector<1x8x32xf32>,
    %c5_i32 = arith.constant 5 : i32
    %148 = arith.index_cast %c5_i32 : i32 to index
    %c0_39 = arith.constant 0 : index
    %c0_40 = arith.constant 0 : index
    %149 = vector.load %arg9[%148, %c0_39, %c0_40] : memref<8x8x96xf32, #tpu.memory_space<vmem>>, vector<1x8x96xf32>
    %150 = vector.shape_cast %149 : vector<1x8x96xf32> to vector<8x96xf32>
    %cst_41 = arith.constant dense<0.000000e+00> : vector<8x96xf32>
    %151 = tpu.matmul %143, %7, %cst_41 {dimension_numbers = #tpu.dot_dimension_numbers<[1], [0], [0], [1], [0, 0, 1, 1], [], []>} : vector<8x32xf32>, vector<32x96xf32>, vector<8x96xf32> -> vector<8x96xf32>
    %152 = vector.extract_strided_slice %150 {offsets = [0, 0], sizes = [8, 64], strides = [1, 1]} : vector<8x96xf32> to vector<8x64xf32>
    %153 = vector.extract_strided_slice %151 {offsets = [0, 0], sizes = [8, 64], strides = [1, 1]} : vector<8x96xf32> to vector<8x64xf32>
    %154 = arith.addf %152, %153 : vector<8x64xf32>
    %155 = arith.negf %154 : vector<8x64xf32>
    %156 = math.exp %155 : vector<8x64xf32>
    %cst_42 = arith.constant 1.000000e+00 : f32
    %157 = vector.broadcast %cst_42 : f32 to vector<8x64xf32>
    %158 = arith.addf %157, %156 : vector<8x64xf32>
    %159 = arith.divf %157, %158 : vector<8x64xf32>
    %160 = vector.extract_strided_slice %159 {offsets = [0, 0], sizes = [8, 32], strides = [1, 1]} : vector<8x64xf32> to vector<8x32xf32>
    %161 = vector.extract_strided_slice %159 {offsets = [0, 32], sizes = [8, 32], strides = [1, 1]} : vector<8x64xf32> to vector<8x32xf32>
    %162 = vector.extract_strided_slice %150 {offsets = [0, 64], sizes = [8, 32], strides = [1, 1]} : vector<8x96xf32> to vector<8x32xf32>
    %163 = vector.extract_strided_slice %151 {offsets = [0, 64], sizes = [8, 32], strides = [1, 1]} : vector<8x96xf32> to vector<8x32xf32>
    %164 = arith.addf %163, %11 : vector<8x32xf32>
    %165 = arith.mulf %160, %164 : vector<8x32xf32>
    %166 = arith.addf %162, %165 : vector<8x32xf32>
    %167 = math.tanh %166 : vector<8x32xf32>
    %168 = arith.subf %143, %167 : vector<8x32xf32>
    %169 = arith.mulf %161, %168 : vector<8x32xf32>
    %170 = arith.addf %167, %169 : vector<8x32xf32>
    %171 = arith.index_cast %c5_i32 : i32 to index
    %c0_43 = arith.constant 0 : index
    %c0_44 = arith.constant 0 : index
    %172 = vector.load %arg10[%171, %c0_43, %c0_44] : memref<8x8x32xf32, #tpu.memory_space<vmem>>, vector<1x8x32xf32>
    %173 = vector.shape_cast %172 : vector<1x8x32xf32> to vector<8x32xf32>
    %174 = vector.shape_cast %170 : vector<8x32xf32> to vector<1x8x32xf32>
    tpu.vector_store %arg10[%171, %c0_43, %c0_44], %174 {strides = array<i32>} : memref<8x8x32xf32, #tpu.memory_space<vmem>>, vector<1x8x32xf32>,
    %c6_i32 = arith.constant 6 : i32
    %175 = arith.index_cast %c6_i32 : i32 to index
    %c0_45 = arith.constant 0 : index
    %c0_46 = arith.constant 0 : index
    %176 = vector.load %arg9[%175, %c0_45, %c0_46] : memref<8x8x96xf32, #tpu.memory_space<vmem>>, vector<1x8x96xf32>
    %177 = vector.shape_cast %176 : vector<1x8x96xf32> to vector<8x96xf32>
    %cst_47 = arith.constant dense<0.000000e+00> : vector<8x96xf32>
    %178 = tpu.matmul %170, %7, %cst_47 {dimension_numbers = #tpu.dot_dimension_numbers<[1], [0], [0], [1], [0, 0, 1, 1], [], []>} : vector<8x32xf32>, vector<32x96xf32>, vector<8x96xf32> -> vector<8x96xf32>
    %179 = vector.extract_strided_slice %177 {offsets = [0, 0], sizes = [8, 64], strides = [1, 1]} : vector<8x96xf32> to vector<8x64xf32>
    %180 = vector.extract_strided_slice %178 {offsets = [0, 0], sizes = [8, 64], strides = [1, 1]} : vector<8x96xf32> to vector<8x64xf32>
    %181 = arith.addf %179, %180 : vector<8x64xf32>
    %182 = arith.negf %181 : vector<8x64xf32>
    %183 = math.exp %182 : vector<8x64xf32>
    %cst_48 = arith.constant 1.000000e+00 : f32
    %184 = vector.broadcast %cst_48 : f32 to vector<8x64xf32>
    %185 = arith.addf %184, %183 : vector<8x64xf32>
    %186 = arith.divf %184, %185 : vector<8x64xf32>
    %187 = vector.extract_strided_slice %186 {offsets = [0, 0], sizes = [8, 32], strides = [1, 1]} : vector<8x64xf32> to vector<8x32xf32>
    %188 = vector.extract_strided_slice %186 {offsets = [0, 32], sizes = [8, 32], strides = [1, 1]} : vector<8x64xf32> to vector<8x32xf32>
    %189 = vector.extract_strided_slice %177 {offsets = [0, 64], sizes = [8, 32], strides = [1, 1]} : vector<8x96xf32> to vector<8x32xf32>
    %190 = vector.extract_strided_slice %178 {offsets = [0, 64], sizes = [8, 32], strides = [1, 1]} : vector<8x96xf32> to vector<8x32xf32>
    %191 = arith.addf %190, %11 : vector<8x32xf32>
    %192 = arith.mulf %187, %191 : vector<8x32xf32>
    %193 = arith.addf %189, %192 : vector<8x32xf32>
    %194 = math.tanh %193 : vector<8x32xf32>
    %195 = arith.subf %170, %194 : vector<8x32xf32>
    %196 = arith.mulf %188, %195 : vector<8x32xf32>
    %197 = arith.addf %194, %196 : vector<8x32xf32>
    %198 = arith.index_cast %c6_i32 : i32 to index
    %c0_49 = arith.constant 0 : index
    %c0_50 = arith.constant 0 : index
    %199 = vector.load %arg10[%198, %c0_49, %c0_50] : memref<8x8x32xf32, #tpu.memory_space<vmem>>, vector<1x8x32xf32>
    %200 = vector.shape_cast %199 : vector<1x8x32xf32> to vector<8x32xf32>
    %201 = vector.shape_cast %197 : vector<8x32xf32> to vector<1x8x32xf32>
    tpu.vector_store %arg10[%198, %c0_49, %c0_50], %201 {strides = array<i32>} : memref<8x8x32xf32, #tpu.memory_space<vmem>>, vector<1x8x32xf32>,
    %c7_i32 = arith.constant 7 : i32
    %202 = arith.index_cast %c7_i32 : i32 to index
    %c0_51 = arith.constant 0 : index
    %c0_52 = arith.constant 0 : index
    %203 = vector.load %arg9[%202, %c0_51, %c0_52] : memref<8x8x96xf32, #tpu.memory_space<vmem>>, vector<1x8x96xf32>
    %204 = vector.shape_cast %203 : vector<1x8x96xf32> to vector<8x96xf32>
    %cst_53 = arith.constant dense<0.000000e+00> : vector<8x96xf32>
    %205 = tpu.matmul %197, %7, %cst_53 {dimension_numbers = #tpu.dot_dimension_numbers<[1], [0], [0], [1], [0, 0, 1, 1], [], []>} : vector<8x32xf32>, vector<32x96xf32>, vector<8x96xf32> -> vector<8x96xf32>
    %206 = vector.extract_strided_slice %204 {offsets = [0, 0], sizes = [8, 64], strides = [1, 1]} : vector<8x96xf32> to vector<8x64xf32>
    %207 = vector.extract_strided_slice %205 {offsets = [0, 0], sizes = [8, 64], strides = [1, 1]} : vector<8x96xf32> to vector<8x64xf32>
    %208 = arith.addf %206, %207 : vector<8x64xf32>
    %209 = arith.negf %208 : vector<8x64xf32>
    %210 = math.exp %209 : vector<8x64xf32>
    %cst_54 = arith.constant 1.000000e+00 : f32
    %211 = vector.broadcast %cst_54 : f32 to vector<8x64xf32>
    %212 = arith.addf %211, %210 : vector<8x64xf32>
    %213 = arith.divf %211, %212 : vector<8x64xf32>
    %214 = vector.extract_strided_slice %213 {offsets = [0, 0], sizes = [8, 32], strides = [1, 1]} : vector<8x64xf32> to vector<8x32xf32>
    %215 = vector.extract_strided_slice %213 {offsets = [0, 32], sizes = [8, 32], strides = [1, 1]} : vector<8x64xf32> to vector<8x32xf32>
    %216 = vector.extract_strided_slice %204 {offsets = [0, 64], sizes = [8, 32], strides = [1, 1]} : vector<8x96xf32> to vector<8x32xf32>
    %217 = vector.extract_strided_slice %205 {offsets = [0, 64], sizes = [8, 32], strides = [1, 1]} : vector<8x96xf32> to vector<8x32xf32>
    %218 = arith.addf %217, %11 : vector<8x32xf32>
    %219 = arith.mulf %214, %218 : vector<8x32xf32>
    %220 = arith.addf %216, %219 : vector<8x32xf32>
    %221 = math.tanh %220 : vector<8x32xf32>
    %222 = arith.subf %197, %221 : vector<8x32xf32>
    %223 = arith.mulf %215, %222 : vector<8x32xf32>
    %224 = arith.addf %221, %223 : vector<8x32xf32>
    %225 = arith.index_cast %c7_i32 : i32 to index
    %c0_55 = arith.constant 0 : index
    %c0_56 = arith.constant 0 : index
    %226 = vector.load %arg10[%225, %c0_55, %c0_56] : memref<8x8x32xf32, #tpu.memory_space<vmem>>, vector<1x8x32xf32>
    %227 = vector.shape_cast %226 : vector<1x8x32xf32> to vector<8x32xf32>
    %228 = vector.shape_cast %224 : vector<8x32xf32> to vector<1x8x32xf32>
    tpu.vector_store %arg10[%225, %c0_55, %c0_56], %228 {strides = array<i32>} : memref<8x8x32xf32, #tpu.memory_space<vmem>>, vector<1x8x32xf32>,
    %c8_i32 = arith.constant 8 : i32
    %c0_57 = arith.constant 0 : index
    %c0_58 = arith.constant 0 : index
    %c0_59 = arith.constant 0 : index
    %229 = vector.load %arg8[%c0_57, %c0_58, %c0_59] : memref<1x8x32xf32, #tpu.memory_space<vmem>>, vector<1x8x32xf32>
    %230 = vector.shape_cast %229 : vector<1x8x32xf32> to vector<8x32xf32>
    %231 = vector.shape_cast %224 : vector<8x32xf32> to vector<1x8x32xf32>
    tpu.vector_store %arg8[%c0_57, %c0_58, %c0_59], %231 {strides = array<i32>} : memref<1x8x32xf32, #tpu.memory_space<vmem>>, vector<1x8x32xf32>,
    return
  }
  func.func @transform_0(%arg0: i32, %arg1: i32) -> (i32, i32) {
    %c0_i32 = arith.constant 0 : i32
    %c0_i32_0 = arith.constant 0 : i32
    return %arg0, %c0_i32 : i32, i32
  }
  func.func @transform_1(%arg0: i32, %arg1: i32) -> (i32, i32) {
    %c0_i32 = arith.constant 0 : i32
    %c0_i32_0 = arith.constant 0 : i32
    %c0_i32_1 = arith.constant 0 : i32
    return %c0_i32, %c0_i32_0 : i32, i32
  }
  func.func @transform_2(%arg0: i32, %arg1: i32) -> (i32, i32, i32) {
    %c1_i32 = arith.constant 1 : i32
    %0 = arith.subi %arg1, %c1_i32 : i32
    %c0_i32 = arith.constant 0 : i32
    %1 = arith.maxsi %0, %c0_i32 : i32
    %c0_i32_0 = arith.constant 0 : i32
    %c0_i32_1 = arith.constant 0 : i32
    %c0_i32_2 = arith.constant 0 : i32
    return %1, %c0_i32_0, %c0_i32_1 : i32, i32, i32
  }
  func.func @transform_3(%arg0: i32, %arg1: i32) -> (i32, i32, i32) {
    %c0_i32 = arith.constant 0 : i32
    %c0_i32_0 = arith.constant 0 : i32
    %c0_i32_1 = arith.constant 0 : i32
    return %arg1, %c0_i32, %c0_i32_0 : i32, i32, i32
  }
  func.func @transform_4(%arg0: i32, %arg1: i32) -> (i32, i32, i32) {
    %c0_i32 = arith.constant 0 : i32
    %c0_i32_0 = arith.constant 0 : i32
    %c0_i32_1 = arith.constant 0 : i32
    return %arg1, %c0_i32, %c0_i32_0 : i32, i32, i32
  }
  func.func @transform_5(%arg0: i32, %arg1: i32) -> (i32, i32, i32) {
    %c0_i32 = arith.constant 0 : i32
    %c0_i32_0 = arith.constant 0 : i32
    %c0_i32_1 = arith.constant 0 : i32
    return %arg1, %c0_i32, %c0_i32_0 : i32, i32, i32
  }
  func.func @transform_6(%arg0: i32, %arg1: i32) -> (i32, i32, i32) {
    %c0_i32 = arith.constant 0 : i32
    %c0_i32_0 = arith.constant 0 : i32
    return %arg1, %arg0, %c0_i32 : i32, i32, i32
  }
}

</mosaic_0001>

<llo_original>
// kernel: tpu_custom_call.1
$region0: #{tpu_custom_call.1}
  #allocation0 [shape = 'u32[]', space=smem, size = 0x4, offset = 0x4, fixed_abs, tag = 'smem constant byte address 0x4 - core index']
  #allocation1 [shape = 'u32[144,128]{1,0:T(1,128)}', space=vmem, size = 0x12000, scoped, tag = 'internal scratch']
  #allocation2 [shape = 'f32[8,8,96]{2,1,0:T(8,128)}', space=vmem, size = 0x8000, scoped, tag = 'scratch operand']
  #allocation3 [shape = 'f32[8,8,32]{2,1,0:T(8,128)}', space=vmem, size = 0x8000, scoped, tag = 'scratch operand']
  %s0 = inlined_call_operand.hbm [shape: f32[8,8], index: 0, kind: input, shape index: {}]
  %s1 = inlined_call_operand.vmem [shape: f32[1,96], index: 1, kind: input, shape index: {}]
  %s2 = inlined_call_operand.hbm [shape: f32[1,32,96], index: 2, kind: input, shape index: {}]
  %s3 = inlined_call_operand.hbm [shape: f32[2,32,96], index: 3, kind: input, shape index: {}]
  %s4 = inlined_call_operand.vmem [shape: f32[2,1,96], index: 4, kind: input, shape index: {}]
  %s5 = inlined_call_operand.vmem [shape: f32[2,1,32], index: 5, kind: input, shape index: {}]
  %s6 = inlined_call_operand.hbm [shape: f32[2,8,32], index: 6, kind: output, shape index: {}]
  %s7 = sld [smem:[#allocation0]]
  $region77: #{tpu_custom_call.1} parent=0
    _
  %s9 = ssub.s32 1, %s7
  %s10 = scalar_select 0, %s9, %s7
  $region1: #{tpu_custom_call.1} parent=0
    #allocation4 [shape = 'u8[4096]{0}', space=vmem, size = 0x1000, scoped, tag = 'input window, operand 0, single buffered']
    #allocation5 [shape = 's32[2]{0}', space=sflag, size = 0x8, scoped, tag = 'scoped memory for tpu_custom_call.1']
    #allocation6 [shape = 's32[2]{0}', space=sflag, size = 0x8, scoped, tag = 'scoped memory for tpu_custom_call.1']
    #allocation7 [shape = 'u8[32768]{0}', space=vmem, size = 0x8000, scoped, tag = 'input window, operand 2']
    #allocation8 [shape = 's32[2]{0}', space=sflag, size = 0x8, scoped, tag = 'scoped memory for tpu_custom_call.1']
    #allocation9 [shape = 'u8[32768]{0}', space=vmem, size = 0x8000, scoped, tag = 'input window, operand 3']
    #allocation10 [shape = 'u8[8192]{0}', space=vmem, size = 0x2000, scoped, tag = 'output window, operand 0']
    %11 = vsyncpa [#allocation5], 0
    %12 = vsyncpa [#allocation8], 0
    %s13 = scalar_lea.sflag [#allocation8], 1
    %14 = vsyncpa %s13, 0
    %15 = vsyncpa [#allocation6], 0
    %s16 = scalar_lea.sflag [#allocation6], 1
    %17 = vsyncpa %s16, 0
    loop: start=0, step=1, limit=4
    $region2: #{tpu_custom_call.1} parent=1 // loop_pre_header
      _
    $region3: #{tpu_custom_call.1} parent=1 // loop_header
      %s19 = sphi 0, %s23
      %p20 = scmp.ge.s32.totalorder %s19, 4
      %s26 = sphi 0, %s38
      %s27 = sphi 0, %s34
      %s28 = sphi 0, %s26
      %s29 = sphi 0, %s27
      %s30 = sphi 0, %s28
      %s31 = sphi 0, %s29
      %s41 = sphi 0, %s43
      %s44 = sphi 0, %s41
      %s45 = sphi 0, %s44
      %s61 = sphi 0, %s45
      %s65 = sphi 0, %s65
      %s67 = sphi 0, %s65
      %s68 = sphi 0, %s67
      %s82 = sphi 0, %s68
      %s94 = sphi 0, %s96
      %s97 = sphi 0, %s94
      %s98 = sphi 0, %s97
      %s114 = sphi 0, %s98
      %s120 = sphi 0, %s122
      %s123 = sphi 0, %s120
      %s124 = sphi 0, %s123
      %s140 = sphi 0, %s124
      %s146 = sphi 0, %s148
      %s149 = sphi 0, %s146
      %s150 = sphi 0, %s149
      %s166 = sphi 0, %s150
      %s172 = sphi 0, %s174
      %s175 = sphi 0, %s172
      %s176 = sphi 0, %s175
      %s192 = sphi 0, %s176
      %s200 = sphi 0, %s202
      %s203 = sphi 0, %s200
      %s204 = sphi 0, %s203
      %s220 = sphi 0, %s204
    $region4: #{tpu_custom_call.1} parent=1 // loop_header_branch
      %22 = sbr.rel (%p20) target = $region8
    $region5: #{tpu_custom_call.1} parent=1 // loop_body
      %s24 = ssub.s32 %s19, 1
      %s25 = ssub.s32 %s19, 2
      %s32 = sadd.s32 1, %s27
      %p33 = scmp.ge.s32.totalorder %s32, 2
      %s34 = scalar_select %p33, 0, %s32
      %s35 = sadd.s32 1, %s26
      %s36 = scalar_select %p33, %s35, %s26
      %p37 = scmp.ge.s32.totalorder %s36, 1
      %s38 = scalar_select %p37, 0, %s36
      %s39 = ssub.s32 %s26, %s38
      %p40 = scmp.eq.s32.totalorder %s39, 0
      %s42 = sadd.s32 %s41, 1
      %s43 = scalar_select %p40, %s41, %s42
      %p46 = pneg %p40
      %p47 = scmp.eq.s32.totalorder %s19, 1
      %p48 = por %p46, %p47
      %p49 = scmp.ne.s32.totalorder %s41, %s44
      %p50 = scmp.eq.s32.totalorder %s19, 0
      %p51 = por %p49, %p50
      %p52 = scmp.ne.s32.totalorder %s41, %s44
      %p53 = scmp.eq.s32.totalorder %s24, 1
      %p54 = por %p52, %p53
      %p55 = scmp.ne.s32.totalorder %s44, %s45
      %p56 = scmp.eq.s32.totalorder %s24, 0
      %p57 = por %p55, %p56
      %p58 = scmp.ne.s32.totalorder %s44, %s45
      %p59 = scmp.eq.s32.totalorder %s25, 1
      %p60 = por %p58, %p59
      %p62 = scmp.ne.s32.totalorder %s45, %s61
      %p63 = scmp.eq.s32.totalorder %s25, 0
      %p64 = por %p62, %p63
      %s66 = sadd.s32 %s65, 1
      %p69 = scmp.eq.s32.totalorder %s19, 1
      %p70 = scmp.ne.s32.totalorder %s65, %s67
      %p71 = scmp.eq.s32.totalorder %s19, 0
      %p72 = por %p70, %p71
      %p73 = scmp.ne.s32.totalorder %s65, %s67
      %p74 = scmp.eq.s32.totalorder %s24, 1
      %p75 = por %p73, %p74
      %p76 = scmp.ne.s32.totalorder %s67, %s68
      %p77 = scmp.eq.s32.totalorder %s24, 0
      %p78 = por %p76, %p77
      %p79 = scmp.ne.s32.totalorder %s67, %s68
      %p80 = scmp.eq.s32.totalorder %s25, 1
      %p81 = por %p79, %p80
      %p83 = scmp.ne.s32.totalorder %s68, %s82
      %p84 = scmp.eq.s32.totalorder %s25, 0
      %p85 = por %p83, %p84
      %s86 = ssub.s32 %s27, 1
      %p87 = scmp.gt.s32.totalorder %s86, 0
      %s88 = scalar_select %p87, %s86, 0
      %s89 = ssub.s32 %s34, 1
      %p90 = scmp.gt.s32.totalorder %s89, 0
      %s91 = scalar_select %p90, %s89, 0
      %s92 = ssub.s32 %s88, %s91
      %p93 = scmp.eq.s32.totalorder %s92, 0
      %s95 = sadd.s32 %s94, 1
      %s96 = scalar_select %p93, %s94, %s95
      %p99 = pneg %p93
      %p100 = scmp.eq.s32.totalorder %s19, 1
      %p101 = por %p99, %p100
      %p102 = scmp.ne.s32.totalorder %s94, %s97
      %p103 = scmp.eq.s32.totalorder %s19, 0
      %p104 = por %p102, %p103
      %p105 = scmp.ne.s32.totalorder %s94, %s97
      %p106 = scmp.eq.s32.totalorder %s24, 1
      %p107 = por %p105, %p106
      %p108 = scmp.ne.s32.totalorder %s97, %s98
      %p109 = scmp.eq.s32.totalorder %s24, 0
      %p110 = por %p108, %p109
      %p111 = scmp.ne.s32.totalorder %s97, %s98
      %p112 = scmp.eq.s32.totalorder %s25, 1
      %p113 = por %p111, %p112
      %p115 = scmp.ne.s32.totalorder %s98, %s114
      %p116 = scmp.eq.s32.totalorder %s25, 0
      %p117 = por %p115, %p116
      %s118 = ssub.s32 %s27, %s34
      %p119 = scmp.eq.s32.totalorder %s118, 0
      %s121 = sadd.s32 %s120, 1
      %s122 = scalar_select %p119, %s120, %s121
      %p125 = pneg %p119
      %p126 = scmp.eq.s32.totalorder %s19, 1
      %p127 = por %p125, %p126
      %p128 = scmp.ne.s32.totalorder %s120, %s123
      %p129 = scmp.eq.s32.totalorder %s19, 0
      %p130 = por %p128, %p129
      %p131 = scmp.ne.s32.totalorder %s120, %s123
      %p132 = scmp.eq.s32.totalorder %s24, 1
      %p133 = por %p131, %p132
      %p134 = scmp.ne.s32.totalorder %s123, %s124
      %p135 = scmp.eq.s32.totalorder %s24, 0
      %p136 = por %p134, %p135
      %p137 = scmp.ne.s32.totalorder %s123, %s124
      %p138 = scmp.eq.s32.totalorder %s25, 1
      %p139 = por %p137, %p138
      %p141 = scmp.ne.s32.totalorder %s124, %s140
      %p142 = scmp.eq.s32.totalorder %s25, 0
      %p143 = por %p141, %p142
      %s144 = ssub.s32 %s27, %s34
      %p145 = scmp.eq.s32.totalorder %s144, 0
      %s147 = sadd.s32 %s146, 1
      %s148 = scalar_select %p145, %s146, %s147
      %p151 = pneg %p145
      %p152 = scmp.eq.s32.totalorder %s19, 1
      %p153 = por %p151, %p152
      %p154 = scmp.ne.s32.totalorder %s146, %s149
      %p155 = scmp.eq.s32.totalorder %s19, 0
      %p156 = por %p154, %p155
      %p157 = scmp.ne.s32.totalorder %s146, %s149
      %p158 = scmp.eq.s32.totalorder %s24, 1
      %p159 = por %p157, %p158
      %p160 = scmp.ne.s32.totalorder %s149, %s150
      %p161 = scmp.eq.s32.totalorder %s24, 0
      %p162 = por %p160, %p161
      %p163 = scmp.ne.s32.totalorder %s149, %s150
      %p164 = scmp.eq.s32.totalorder %s25, 1
      %p165 = por %p163, %p164
      %p167 = scmp.ne.s32.totalorder %s150, %s166
      %p168 = scmp.eq.s32.totalorder %s25, 0
      %p169 = por %p167, %p168
      %s170 = ssub.s32 %s27, %s34
      %p171 = scmp.eq.s32.totalorder %s170, 0
      %s173 = sadd.s32 %s172, 1
      %s174 = scalar_select %p171, %s172, %s173
      %p177 = pneg %p171
      %p178 = scmp.eq.s32.totalorder %s19, 1
      %p179 = por %p177, %p178
      %p180 = scmp.ne.s32.totalorder %s172, %s175
      %p181 = scmp.eq.s32.totalorder %s19, 0
      %p182 = por %p180, %p181
      %p183 = scmp.ne.s32.totalorder %s172, %s175
      %p184 = scmp.eq.s32.totalorder %s24, 1
      %p185 = por %p183, %p184
      %p186 = scmp.ne.s32.totalorder %s175, %s176
      %p187 = scmp.eq.s32.totalorder %s24, 0
      %p188 = por %p186, %p187
      %p189 = scmp.ne.s32.totalorder %s175, %s176
      %p190 = scmp.eq.s32.totalorder %s25, 1
      %p191 = por %p189, %p190
      %p193 = scmp.ne.s32.totalorder %s176, %s192
      %p194 = scmp.eq.s32.totalorder %s25, 0
      %p195 = por %p193, %p194
      %s196 = ssub.s32 %s27, %s34
      %s197 = ssub.s32 %s26, %s38
      %s198 = sor.u32 %s196, %s197
      %p199 = scmp.eq.s32.totalorder %s198, 0
      %s201 = sadd.s32 %s200, 1
      %s202 = scalar_select %p199, %s200, %s201
      %p205 = pneg %p199
      %p206 = scmp.eq.s32.totalorder %s19, 1
      %p207 = por %p205, %p206
      %p208 = scmp.ne.s32.totalorder %s200, %s203
      %p209 = scmp.eq.s32.totalorder %s19, 0
      %p210 = por %p208, %p209
      %p211 = scmp.ne.s32.totalorder %s200, %s203
      %p212 = scmp.eq.s32.totalorder %s24, 1
      %p213 = por %p211, %p212
      %p214 = scmp.ne.s32.totalorder %s203, %s204
      %p215 = scmp.eq.s32.totalorder %s24, 0
      %p216 = por %p214, %p215
      %p217 = scmp.ne.s32.totalorder %s203, %s204
      %p218 = scmp.eq.s32.totalorder %s25, 1
      %p219 = por %p217, %p218
      %p221 = scmp.ne.s32.totalorder %s204, %s220
      %p222 = scmp.eq.s32.totalorder %s25, 0
      %p223 = por %p221, %p222
      %p224 = scmp.le.s32.totalorder 1, %s19
      %p225 = scmp.lt.s32.totalorder %s19, 3
      %p226 = pnand %p224, %p225
      %p227 = pneg %p226
      // Predicated region
      $region9: #{tpu_custom_call.1} parent=5 // pred_check
        _
      $region10: #{tpu_custom_call.1} parent=5 // pred_check_branch
        %229 = sbr.rel (%p226) target = $region12
      $region11: #{tpu_custom_call.1} parent=5 // pred_region
        %s230 = ssub.s32 %s19, 1
        // Predicated region
        $region13: #{tpu_custom_call.1} parent=11 // pred_check
          %p231 = pneg %p57
        $region14: #{tpu_custom_call.1} parent=11 // pred_check_branch
          %233 = sbr.rel (%p231) target = $region16
        $region15: #{tpu_custom_call.1} parent=11 // pred_region
          %s235 = ssub.s32 128, 128
          %236 = vsyncadd [#allocation5], %s235
          %s237 = smul.addr %s28, 128
          %s238 = scalar_lea.hbm %s0, %s237
          %s240 = sshll.u32 [#allocation4], 4
          %s241 = int_to_ptr.vmem [resolvable:$true] %s240
          %243 = dma.hbm_to_vmem [thread:$0]  %s238, 128, %s241, [#allocation5]
        $region16: #{tpu_custom_call.1} parent=11 // pred_fallthru
          _
        // Predicated region
        $region17: #{tpu_custom_call.1} parent=11 // pred_check
          %p244 = pneg %p78
        $region18: #{tpu_custom_call.1} parent=11 // pred_check_branch
          %246 = sbr.rel (%p244) target = $region20
        $region19: #{tpu_custom_call.1} parent=11 // pred_region
          _
        $region20: #{tpu_custom_call.1} parent=11 // pred_fallthru
          _
      $region12: #{tpu_custom_call.1} parent=5 // pred_fallthru
        _
      %p247 = scmp.lt.s32.totalorder %s19, 2
      // Predicated region
      $region21: #{tpu_custom_call.1} parent=5 // pred_check
        %p248 = pneg %p247
      $region22: #{tpu_custom_call.1} parent=5 // pred_check_branch
        %250 = sbr.rel (%p248) target = $region24
      $region23: #{tpu_custom_call.1} parent=5 // pred_region
        // Predicated region
        $region25: #{tpu_custom_call.1} parent=23 // pred_check
          %p251 = pneg %p104
        $region26: #{tpu_custom_call.1} parent=23 // pred_check_branch
          %253 = sbr.rel (%p251) target = $region28
        $region27: #{tpu_custom_call.1} parent=23 // pred_region
          %s254 = sand.u32 %s19, 1
          %s255 = scalar_lea.sflag [#allocation8], %s254
          %s256 = sand.u32 %s94, 1
          %s257 = smul.addr %s256, 32
          %s258 = scalar_lea.vmem [#allocation7], %s257
          %s259 = ssub.s32 %s27, 1
          %p260 = scmp.gt.s32.totalorder %s259, 0
          %s261 = scalar_select %p260, %s259, 0
          %s263 = ssub.s32 512, 512
          %264 = vsyncadd %s255, %s263
          %s265 = smul.addr %s261, 4
          %s266 = smul.addr %s265, 128
          %s267 = scalar_lea.hbm %s2, %s266
          %s268 = sshll.u32 %s258, 4
          %s269 = int_to_ptr.vmem [resolvable:$true] %s268
          %274 = dma.hbm_to_vmem [thread:$0]  %s267, 512, %s269, %s255, 128, 128, 8
        $region28: #{tpu_custom_call.1} parent=23 // pred_fallthru
          _
        // Predicated region
        $region29: #{tpu_custom_call.1} parent=23 // pred_check
          %p275 = pneg %p130
        $region30: #{tpu_custom_call.1} parent=23 // pred_check_branch
          %277 = sbr.rel (%p275) target = $region32
        $region31: #{tpu_custom_call.1} parent=23 // pred_region
          %s278 = sand.u32 %s19, 1
          %s279 = scalar_lea.sflag [#allocation8], %s278
          %s280 = sand.u32 %s120, 1
          %s281 = smul.addr %s280, 32
          %s282 = scalar_lea.vmem [#allocation9], %s281
          %s284 = ssub.s32 512, 512
          %285 = vsyncadd %s279, %s284
          %s286 = smul.addr %s27, 4
          %s287 = smul.addr %s286, 128
          %s288 = scalar_lea.hbm %s3, %s287
          %s289 = sshll.u32 %s282, 4
          %s290 = int_to_ptr.vmem [resolvable:$true] %s289
          %295 = dma.hbm_to_vmem [thread:$0]  %s288, 512, %s290, %s279, 128, 128, 8
        $region32: #{tpu_custom_call.1} parent=23 // pred_fallthru
          _
        // Predicated region
        $region33: #{tpu_custom_call.1} parent=23 // pred_check
          %p296 = pneg %p156
        $region34: #{tpu_custom_call.1} parent=23 // pred_check_branch
          %298 = sbr.rel (%p296) target = $region36
        $region35: #{tpu_custom_call.1} parent=23 // pred_region
          %p299 = scmp.lt.s32.totalorder %s27, 1
          %s300 = scalar_select %p299, %s27, 1
          %s301 = scalar_lea.vmem %s4, %s300
        $region36: #{tpu_custom_call.1} parent=23 // pred_fallthru
          _
        // Predicated region
        $region37: #{tpu_custom_call.1} parent=23 // pred_check
          %p302 = pneg %p182
        $region38: #{tpu_custom_call.1} parent=23 // pred_check_branch
          %304 = sbr.rel (%p302) target = $region40
        $region39: #{tpu_custom_call.1} parent=23 // pred_region
          %p305 = scmp.lt.s32.totalorder %s27, 1
          %s306 = scalar_select %p305, %s27, 1
          %s307 = scalar_lea.vmem %s5, %s306
        $region40: #{tpu_custom_call.1} parent=23 // pred_fallthru
          _
      $region24: #{tpu_custom_call.1} parent=5 // pred_fallthru
        _
      %p308 = scmp.le.s32.totalorder 1, %s19
      %p309 = scmp.lt.s32.totalorder %s19, 3
      %p310 = pnand %p308, %p309
      %p311 = pneg %p310
      // Predicated region
      $region41: #{tpu_custom_call.1} parent=5 // pred_check
        _
      $region42: #{tpu_custom_call.1} parent=5 // pred_check_branch
        %313 = sbr.rel (%p310) target = $region44
      $region43: #{tpu_custom_call.1} parent=5 // pred_region
        %s314 = ssub.s32 %s19, 1
        // Predicated region
        $region45: #{tpu_custom_call.1} parent=43 // pred_check
          %p315 = pneg %p57
        $region46: #{tpu_custom_call.1} parent=43 // pred_check_branch
          %317 = sbr.rel (%p315) target = $region48
        $region47: #{tpu_custom_call.1} parent=43 // pred_region
          %318 = dma.done [#allocation5], 128
        $region48: #{tpu_custom_call.1} parent=43 // pred_fallthru
          _
        %s319 = sand.u32 %s24, 1
        %s320 = scalar_lea.sflag [#allocation8], %s319
        %s321 = sand.u32 %s97, 1
        %s322 = smul.addr %s321, 32
        %s323 = scalar_lea.vmem [#allocation7], %s322
        // Predicated region
        $region49: #{tpu_custom_call.1} parent=43 // pred_check
          %p324 = pneg %p110
        $region50: #{tpu_custom_call.1} parent=43 // pred_check_branch
          %326 = sbr.rel (%p324) target = $region52
        $region51: #{tpu_custom_call.1} parent=43 // pred_region
          %327 = dma.done %s320, 512
        $region52: #{tpu_custom_call.1} parent=43 // pred_fallthru
          _
        %s328 = sand.u32 %s24, 1
        %s329 = scalar_lea.sflag [#allocation8], %s328
        %s330 = sand.u32 %s123, 1
        %s331 = smul.addr %s330, 32
        %s332 = scalar_lea.vmem [#allocation9], %s331
        // Predicated region
        $region53: #{tpu_custom_call.1} parent=43 // pred_check
          %p333 = pneg %p136
        $region54: #{tpu_custom_call.1} parent=43 // pred_check_branch
          %335 = sbr.rel (%p333) target = $region56
        $region55: #{tpu_custom_call.1} parent=43 // pred_region
          %336 = dma.done %s329, 512
        $region56: #{tpu_custom_call.1} parent=43 // pred_fallthru
          _
        %p337 = pneg %p57
        %p338 = pneg %p54
        %p339 = pneg %p78
        %p340 = pneg %p75
        %s341 = sand.u32 %s24, 1
        %s342 = scalar_lea.sflag [#allocation8], %s341
        %s343 = sand.u32 %s97, 1
        %s344 = smul.addr %s343, 32
        %s345 = scalar_lea.vmem [#allocation7], %s344
        %p346 = pneg %p110
        %p347 = pneg %p107
        %s348 = sand.u32 %s24, 1
        %s349 = scalar_lea.sflag [#allocation8], %s348
        %s350 = sand.u32 %s123, 1
        %s351 = smul.addr %s350, 32
        %s352 = scalar_lea.vmem [#allocation9], %s351
        %p353 = pneg %p136
        %p354 = pneg %p133
        %p355 = scmp.lt.s32.totalorder %s29, 1
        %s356 = scalar_select %p355, %s29, 1
        %s357 = scalar_lea.vmem %s4, %s356
        %p358 = pneg %p162
        %p359 = pneg %p159
        %p360 = scmp.lt.s32.totalorder %s29, 1
        %s361 = scalar_select %p360, %s29, 1
        %s362 = scalar_lea.vmem %s5, %s361
        %p363 = pneg %p188
        %p364 = pneg %p185
        %p365 = pneg %p216
        %p366 = pneg %p213
        %s367 = sand.u32 %s203, 1
        %s368 = scalar_lea.sflag [#allocation6], %s367
        %s369 = sand.u32 %s203, 1
        %s370 = smul.addr %s369, 8
        %s371 = scalar_lea.vmem [#allocation10], %s370
        %s372 = ssub.s32 %s29, 1
        %p373 = scmp.gt.s32.totalorder %s372, 0
        %s374 = scalar_select %p373, %s372, 0
        %p375 = scmp.lt.s32.totalorder %s29, 1
        %s376 = scalar_select %p375, %s29, 1
        %s377 = scalar_lea.vmem %s4, %s376
        %p378 = scmp.lt.s32.totalorder %s29, 1
        %s379 = scalar_select %p378, %s29, 1
        %s380 = scalar_lea.vmem %s5, %s379
        %p381 = scmp.eq.s32.totalorder %s29, 0
        // Predicated region
        $region57: #{tpu_custom_call.1} parent=43 // pred_check
          %p382 = pneg %p381
        $region58: #{tpu_custom_call.1} parent=43 // pred_check_branch
          %384 = sbr.rel (%p382) target = $region60
        $region59: #{tpu_custom_call.1} parent=43 // pred_region
          %v385 = vld [vmem:[#allocation4] sm:$0xff]
          %386 = vxpose.xlu0.b32.start [1/16] %v385, 128
          %387 = vxpose.xlu0.b32.cont [2/16] 0.0, 128
          %388 = vxpose.xlu0.b32.cont [3/16] 0.0, 128
          %389 = vxpose.xlu0.b32.cont [4/16] 0.0, 128
          %390 = vxpose.xlu0.b32.cont [5/16] 0.0, 128
          %391 = vxpose.xlu0.b32.cont [6/16] 0.0, 128
          %392 = vxpose.xlu0.b32.cont [7/16] 0.0, 128
          %393 = vxpose.xlu0.b32.cont [8/16] 0.0, 128
          %394 = vxpose.xlu0.b32.cont [9/16] 0.0, 128
          %395 = vxpose.xlu0.b32.cont [10/16] 0.0, 128
          %396 = vxpose.xlu0.b32.cont [11/16] 0.0, 128
          %397 = vxpose.xlu0.b32.cont [12/16] 0.0, 128
          %398 = vxpose.xlu0.b32.cont [13/16] 0.0, 128
          %399 = vxpose.xlu0.b32.cont [14/16] 0.0, 128
          %400 = vxpose.xlu0.b32.cont [15/16] 0.0, 128
          %401 = vxpose.xlu0.b32.end [16/16] 0.0, 128
          %v402 = vpop.trf.xlu0
          %v403 = vpop.trf.xlu0
          %v404 = vpop.trf.xlu0
          %v405 = vpop.trf.xlu0
          %v406 = vpop.trf.xlu0
          %v407 = vpop.trf.xlu0
          %v408 = vpop.trf.xlu0
          %v409 = vpop.trf.xlu0
          %v410 = vpop.trf.xlu0
          %v411 = vpop.trf.xlu0
          %v412 = vpop.trf.xlu0
          %v413 = vpop.trf.xlu0
          %v414 = vpop.trf.xlu0
          %v415 = vpop.trf.xlu0
          %v416 = vpop.trf.xlu0
          %v417 = vpop.trf.xlu0
          %v418 = vlaneseq
          %v419 = vshrl.u32 %v418, 7
          %v420 = vsub.s32 0, %v419
          %v421 = vrot.slane %v402, %v420
          %423 = vbcast.lane.b32.xlu0 %v421, 256
          %v424 = vpop.permute.xlu0 %423
          %v425 = vlaneseq
          %v426 = vshrl.u32 %v425, 7
          %v427 = vsub.s32 1, %v426
          %v428 = vrot.slane %v402, %v427
          %430 = vbcast.lane.b32.xlu0 %v428, 256
          %v431 = vpop.permute.xlu0 %430
          %v432 = vlaneseq
          %v433 = vshrl.u32 %v432, 7
          %v434 = vsub.s32 2, %v433
          %v435 = vrot.slane %v402, %v434
          %437 = vbcast.lane.b32.xlu0 %v435, 256
          %v438 = vpop.permute.xlu0 %437
          %v439 = vlaneseq
          %v440 = vshrl.u32 %v439, 7
          %v441 = vsub.s32 3, %v440
          %v442 = vrot.slane %v402, %v441
          %444 = vbcast.lane.b32.xlu0 %v442, 256
          %v445 = vpop.permute.xlu0 %444
          %v446 = vlaneseq
          %v447 = vshrl.u32 %v446, 7
          %v448 = vsub.s32 4, %v447
          %v449 = vrot.slane %v402, %v448
          %451 = vbcast.lane.b32.xlu0 %v449, 256
          %v452 = vpop.permute.xlu0 %451
          %v453 = vlaneseq
          %v454 = vshrl.u32 %v453, 7
          %v455 = vsub.s32 5, %v454
          %v456 = vrot.slane %v402, %v455
          %458 = vbcast.lane.b32.xlu0 %v456, 256
          %v459 = vpop.permute.xlu0 %458
          %v460 = vlaneseq
          %v461 = vshrl.u32 %v460, 7
          %v462 = vsub.s32 6, %v461
          %v463 = vrot.slane %v402, %v462
          %465 = vbcast.lane.b32.xlu0 %v463, 256
          %v466 = vpop.permute.xlu0 %465
          %v467 = vlaneseq
          %v468 = vshrl.u32 %v467, 7
          %v469 = vsub.s32 7, %v468
          %v470 = vrot.slane %v402, %v469
          %472 = vbcast.lane.b32.xlu0 %v470, 256
          %v473 = vpop.permute.xlu0 %472
          %v474 = vld [vmem:[%s1] sm:$0x1]
          %v476 = vlaneseq
          %v477 = vshrl.u32 %v476, 7
          %v478 = vsub.s32 0, %v477
          %v479 = vrot.slane %v474, %v478
          %v481 = vmul.f32 %v424, %v479
          %v482 = vmul.f32 %v431, %v479
          %v483 = vmul.f32 %v438, %v479
          %v484 = vmul.f32 %v445, %v479
          %v485 = vmul.f32 %v452, %v479
          %v486 = vmul.f32 %v459, %v479
          %v487 = vmul.f32 %v466, %v479
          %v488 = vmul.f32 %v473, %v479
          %v489 = vld [vmem:[%s377] sm:$0x1]
          %v491 = vlaneseq
          %v492 = vshrl.u32 %v491, 7
          %v493 = vsub.s32 0, %v492
          %v494 = vrot.slane %v489, %v493
          %v496 = vadd.f32 %v481, %v494
          %v497 = vadd.f32 %v482, %v494
          %v498 = vadd.f32 %v483, %v494
          %v499 = vadd.f32 %v484, %v494
          %v500 = vadd.f32 %v485, %v494
          %v501 = vadd.f32 %v486, %v494
          %v502 = vadd.f32 %v487, %v494
          %v503 = vadd.f32 %v488, %v494
          %vm504 = vcmask 785408
          %505 = vst.msk [vmem:[#allocation2] sm:$0xff] %vm504, %v496
          %506 = vst.msk [vmem:[#allocation2 + $0x8] sm:$0xff] %vm504, %v497
          %507 = vst.msk [vmem:[#allocation2 + $0x10] sm:$0xff] %vm504, %v498
          %508 = vst.msk [vmem:[#allocation2 + $0x18] sm:$0xff] %vm504, %v499
          %509 = vst.msk [vmem:[#allocation2 + $0x20] sm:$0xff] %vm504, %v500
          %510 = vst.msk [vmem:[#allocation2 + $0x28] sm:$0xff] %vm504, %v501
          %511 = vst.msk [vmem:[#allocation2 + $0x30] sm:$0xff] %vm504, %v502
          %512 = vst.msk [vmem:[#allocation2 + $0x38] sm:$0xff] %vm504, %v503
        $region60: #{tpu_custom_call.1} parent=43 // pred_fallthru
          _
        %p513 = scmp.gt.s32.totalorder %s29, 0
        // Predicated region
        $region61: #{tpu_custom_call.1} parent=43 // pred_check
          %p514 = pneg %p513
        $region62: #{tpu_custom_call.1} parent=43 // pred_check_branch
          %516 = sbr.rel (%p514) target = $region64
        $region63: #{tpu_custom_call.1} parent=43 // pred_region
          %v517 = vld [vmem:[#allocation3] sm:$0xff]
          %v518 = vld [vmem:[#allocation3 + $0x8] sm:$0xff]
          %v519 = vld [vmem:[#allocation3 + $0x10] sm:$0xff]
          %v520 = vld [vmem:[#allocation3 + $0x18] sm:$0xff]
          %v521 = vld [vmem:[#allocation3 + $0x20] sm:$0xff]
          %v522 = vld [vmem:[#allocation3 + $0x28] sm:$0xff]
          %v523 = vld [vmem:[#allocation3 + $0x30] sm:$0xff]
          %v524 = vld [vmem:[#allocation3 + $0x38] sm:$0xff]
          %v525 = vld [vmem:[%s323] sm:$0xff]
          %v526 = vld [vmem:[%s323 + $0x8] sm:$0xff]
          %v527 = vld [vmem:[%s323 + $0x10] sm:$0xff]
          %v528 = vld [vmem:[%s323 + $0x18] sm:$0xff]
          %v529 = vld [vmem:[%s377] sm:$0x1]
          %v531 = vlaneseq
          %v532 = vshrl.u32 %v531, 7
          %v533 = vsub.s32 0, %v532
          %v534 = vrot.slane %v529, %v533
          %vm536 = vcmask 261120
          %v538 = vsel %vm536, %v517, 0
          %v541 = vsel %vm536, %v518, 0
          %v544 = vsel %vm536, %v519, 0
          %v547 = vsel %vm536, %v520, 0
          %v550 = vsel %vm536, %v521, 0
          %v553 = vsel %vm536, %v522, 0
          %v556 = vsel %vm536, %v523, 0
          %v559 = vsel %vm536, %v524, 0
          %561 = vmatprep.subr.mxu0 0.0
          %562 = vmatpush1.msra.mxu0 %v525
          %563 = vmatprep.subr.mxu0 0.0
          %564 = vmatpush1.msra.mxu0 %v526
          %565 = vmatprep.subr.mxu0 0.0
          %566 = vmatpush1.msra.mxu0 %v527
          %567 = vmatprep.subr.mxu0 0.0
          %568 = vmatpush1.msra.mxu0 %v528
          %569 = vmatprep.subr.mxu0 0.0
          %570 = vmatpush1.msra.mxu0 0.0
          %571 = vmatprep.subr.mxu0 0.0
          %572 = vmatpush1.msra.mxu0 0.0
          %573 = vmatprep.subr.mxu0 0.0
          %574 = vmatpush1.msra.mxu0 0.0
          %575 = vmatprep.subr.mxu0 0.0
          %576 = vmatpush1.msra.mxu0 0.0
          %577 = vmatprep.subr.mxu0 0.0
          %578 = vmatpush1.msra.mxu0 0.0
          %579 = vmatprep.subr.mxu0 0.0
          %580 = vmatpush1.msra.mxu0 0.0
          %581 = vmatprep.subr.mxu0 0.0
          %582 = vmatpush1.msra.mxu0 0.0
          %583 = vmatprep.subr.mxu0 0.0
          %584 = vmatpush1.msra.mxu0 0.0
          %585 = vmatprep.subr.mxu0 0.0
          %586 = vmatpush1.msra.mxu0 0.0
          %587 = vmatprep.subr.mxu0 0.0
          %588 = vmatpush1.msra.mxu0 0.0
          %589 = vmatprep.subr.mxu0 0.0
          %590 = vmatpush1.msra.mxu0 0.0
          %591 = vmatprep.subr.mxu0 0.0
          %592 = vmatpush1.msra.mxu0 0.0
          %593 = vmatprep.subr.mxu0 0.0
          %594 = vmatpush1.msra.mxu0 0.0
          %595 = vmatprep.subr.mxu0 0.0
          %596 = vmatpush1.msra.mxu0 0.0
          %597 = vmatprep.subr.mxu0 0.0
          %598 = vmatpush1.msra.mxu0 0.0
          %599 = vmatprep.subr.mxu0 0.0
          %600 = vmatpush1.msra.mxu0 0.0
          %601 = vmatprep.subr.mxu0 0.0
          %602 = vmatpush1.msra.mxu0 0.0
          %603 = vmatprep.subr.mxu0 0.0
          %604 = vmatpush1.msra.mxu0 0.0
          %605 = vmatprep.subr.mxu0 0.0
          %606 = vmatpush1.msra.mxu0 0.0
          %607 = vmatprep.subr.mxu0 0.0
          %608 = vmatpush1.msra.mxu0 0.0
          %609 = vmatprep.subr.mxu0 0.0
          %610 = vmatpush1.msra.mxu0 0.0
          %611 = vmatprep.subr.mxu0 0.0
          %612 = vmatpush1.msra.mxu0 0.0
          %613 = vmatprep.subr.mxu0 0.0
          %614 = vmatpush1.msra.mxu0 0.0
          %615 = vmatprep.subr.mxu0 0.0
          %616 = vmatpush1.msra.mxu0 0.0
          %617 = vmatprep.subr.mxu0 0.0
          %618 = vmatpush1.msra.mxu0 0.0
          %619 = vmatprep.subr.mxu0 0.0
          %620 = vmatpush1.msra.mxu0 0.0
          %621 = vmatprep.subr.mxu0 0.0
          %622 = vmatpush1.msra.mxu0 0.0
          %623 = vmatprep.subr.mxu0 0.0
          %624 = vmatpush1.msra.mxu0 0.0
          %625 = vmatprep.mubr.f32.mxu0 0.0
          %626 = vmatmul.mubr.f32.gmra.mrb[0].mxu0 %v538
          %v627 = vpop.f32.mrb[0].mxu0
          %v628 = vadd.f32 %v534, %v627
          %v629 = vpop.f32.mrb[0].mxu0
          %630 = vmatprep.mubr.f32.mxu0 0.0
          %631 = vmatmul.mubr.f32.gmra.mrb[0].mxu0 %v541
          %v632 = vpop.f32.mrb[0].mxu0
          %v633 = vadd.f32 %v534, %v632
          %v634 = vpop.f32.mrb[0].mxu0
          %635 = vmatprep.mubr.f32.mxu0 0.0
          %636 = vmatmul.mubr.f32.gmra.mrb[0].mxu0 %v544
          %v637 = vpop.f32.mrb[0].mxu0
          %v638 = vadd.f32 %v534, %v637
          %v639 = vpop.f32.mrb[0].mxu0
          %640 = vmatprep.mubr.f32.mxu0 0.0
          %641 = vmatmul.mubr.f32.gmra.mrb[0].mxu0 %v547
          %v642 = vpop.f32.mrb[0].mxu0
          %v643 = vadd.f32 %v534, %v642
          %v644 = vpop.f32.mrb[0].mxu0
          %645 = vmatprep.mubr.f32.mxu0 0.0
          %646 = vmatmul.mubr.f32.gmra.mrb[0].mxu0 %v550
          %v647 = vpop.f32.mrb[0].mxu0
          %v648 = vadd.f32 %v534, %v647
          %v649 = vpop.f32.mrb[0].mxu0
          %650 = vmatprep.mubr.f32.mxu0 0.0
          %651 = vmatmul.mubr.f32.gmra.mrb[0].mxu0 %v553
          %v652 = vpop.f32.mrb[0].mxu0
          %v653 = vadd.f32 %v534, %v652
          %v654 = vpop.f32.mrb[0].mxu0
          %655 = vmatprep.mubr.f32.mxu0 0.0
          %656 = vmatmul.mubr.f32.gmra.mrb[0].mxu0 %v556
          %v657 = vpop.f32.mrb[0].mxu0
          %v658 = vadd.f32 %v534, %v657
          %v659 = vpop.f32.mrb[0].mxu0
          %660 = vmatprep.mubr.f32.mxu0 0.0
          %661 = vmatmul.mubr.f32.gmra.mrb[0].mxu0 %v559
          %v662 = vpop.f32.mrb[0].mxu0
          %v663 = vadd.f32 %v534, %v662
          %v664 = vpop.f32.mrb[0].mxu0
          %665 = vdwg.mxu0
          %vm666 = vcmask 785408
          %667 = vst.msk [vmem:[#allocation2] sm:$0xff] %vm666, %v628
          %668 = vst.msk [vmem:[#allocation2 + $0x8] sm:$0xff] %vm666, %v633
          %669 = vst.msk [vmem:[#allocation2 + $0x10] sm:$0xff] %vm666, %v638
          %670 = vst.msk [vmem:[#allocation2 + $0x18] sm:$0xff] %vm666, %v643
          %671 = vst.msk [vmem:[#allocation2 + $0x20] sm:$0xff] %vm666, %v648
          %672 = vst.msk [vmem:[#allocation2 + $0x28] sm:$0xff] %vm666, %v653
          %673 = vst.msk [vmem:[#allocation2 + $0x30] sm:$0xff] %vm666, %v658
          %674 = vst.msk [vmem:[#allocation2 + $0x38] sm:$0xff] %vm666, %v663
        $region64: #{tpu_custom_call.1} parent=43 // pred_fallthru
          _
        %v675 = vld [vmem:[%s332] sm:$0xff]
        %v676 = vld [vmem:[%s332 + $0x8] sm:$0xff]
        %v677 = vld [vmem:[%s332 + $0x10] sm:$0xff]
        %v678 = vld [vmem:[%s332 + $0x18] sm:$0xff]
        %v679 = vld [vmem:[%s380] sm:$0x1]
        %v681 = vlaneseq
        %v682 = vshrl.u32 %v681, 7
        %v683 = vsub.s32 0, %v682
        %v684 = vrot.slane %v679, %v683
        %v685 = vld [vmem:[#allocation2] sm:$0xff]
        %vm686 = vcmask 261120
        %v688 = vsel %vm686, 0.0, 0
        %690 = vmatprep.subr.mxu0 0.0
        %691 = vmatpush1.msra.mxu0 %v675
        %692 = vmatprep.subr.mxu0 0.0
        %693 = vmatpush1.msra.mxu0 %v676
        %694 = vmatprep.subr.mxu0 0.0
        %695 = vmatpush1.msra.mxu0 %v677
        %696 = vmatprep.subr.mxu0 0.0
        %697 = vmatpush1.msra.mxu0 %v678
        %698 = vmatprep.subr.mxu0 0.0
        %699 = vmatpush1.msra.mxu0 0.0
        %700 = vmatprep.subr.mxu0 0.0
        %701 = vmatpush1.msra.mxu0 0.0
        %702 = vmatprep.subr.mxu0 0.0
        %703 = vmatpush1.msra.mxu0 0.0
        %704 = vmatprep.subr.mxu0 0.0
        %705 = vmatpush1.msra.mxu0 0.0
        %706 = vmatprep.subr.mxu0 0.0
        %707 = vmatpush1.msra.mxu0 0.0
        %708 = vmatprep.subr.mxu0 0.0
        %709 = vmatpush1.msra.mxu0 0.0
        %710 = vmatprep.subr.mxu0 0.0
        %711 = vmatpush1.msra.mxu0 0.0
        %712 = vmatprep.subr.mxu0 0.0
        %713 = vmatpush1.msra.mxu0 0.0
        %714 = vmatprep.subr.mxu0 0.0
        %715 = vmatpush1.msra.mxu0 0.0
        %716 = vmatprep.subr.mxu0 0.0
        %717 = vmatpush1.msra.mxu0 0.0
        %718 = vmatprep.subr.mxu0 0.0
        %719 = vmatpush1.msra.mxu0 0.0
        %720 = vmatprep.subr.mxu0 0.0
        %721 = vmatpush1.msra.mxu0 0.0
        %722 = vmatprep.subr.mxu0 0.0
        %723 = vmatpush1.msra.mxu0 0.0
        %724 = vmatprep.subr.mxu0 0.0
        %725 = vmatpush1.msra.mxu0 0.0
        %726 = vmatprep.subr.mxu0 0.0
        %727 = vmatpush1.msra.mxu0 0.0
        %728 = vmatprep.subr.mxu0 0.0
        %729 = vmatpush1.msra.mxu0 0.0
        %730 = vmatprep.subr.mxu0 0.0
        %731 = vmatpush1.msra.mxu0 0.0
        %732 = vmatprep.subr.mxu0 0.0
        %733 = vmatpush1.msra.mxu0 0.0
        %734 = vmatprep.subr.mxu0 0.0
        %735 = vmatpush1.msra.mxu0 0.0
        %736 = vmatprep.subr.mxu0 0.0
        %737 = vmatpush1.msra.mxu0 0.0
        %738 = vmatprep.subr.mxu0 0.0
        %739 = vmatpush1.msra.mxu0 0.0
        %740 = vmatprep.subr.mxu0 0.0
        %741 = vmatpush1.msra.mxu0 0.0
        %742 = vmatprep.subr.mxu0 0.0
        %743 = vmatpush1.msra.mxu0 0.0
        %744 = vmatprep.subr.mxu0 0.0
        %745 = vmatpush1.msra.mxu0 0.0
        %746 = vmatprep.subr.mxu0 0.0
        %747 = vmatpush1.msra.mxu0 0.0
        %748 = vmatprep.subr.mxu0 0.0
        %749 = vmatpush1.msra.mxu0 0.0
        %750 = vmatprep.subr.mxu0 0.0
        %751 = vmatpush1.msra.mxu0 0.0
        %752 = vmatprep.subr.mxu0 0.0
        %753 = vmatpush1.msra.mxu0 0.0
        %754 = vmatprep.mubr.f32.mxu0 0.0
        %755 = vmatmul.mubr.f32.gmra.mrb[0].mxu0 %v688
        %v756 = vpop.f32.mrb[0].mxu0
        %v757 = vadd.f32 0.0, %v756
        %v758 = vpop.f32.mrb[0].mxu0
        %759 = vdwg.mxu0
        %v760 = vadd.f32 %v685, %v757
        %v761 = vxor.u32 %v760, 2147483648
        %v762 = vmul.f32 %v761, 1.442695
        %v763 = vpow.pop %v762
        %v764 = vadd.f32 %v763, 1.0
        %v765 = vrcp.pop %v764
        %v766 = vmul.f32 1.0, %v765
        %767 = vrot.lane.b32.xlu0 %v684, 64
        %v768 = vpop.permute.xlu0 %767
        %v770 = vadd.f32 %v757, %v768
        %772 = vrot.lane.b32.xlu0 %v770, 64
        %v773 = vpop.permute.xlu0 %772
        %v775 = vmul.f32 %v766, %v773
        %777 = vrot.lane.b32.xlu0 %v775, 64
        %v778 = vpop.permute.xlu0 %777
        %v780 = vadd.f32 %v685, %v778
        %v781 = vtanh.pop %v780
        %v782 = vsub.f32 0.0, %v781
        %784 = vrot.lane.b32.xlu0 %v782, 96
        %v785 = vpop.permute.xlu0 %784
        %v787 = vmul.f32 %v766, %v785
        %789 = vrot.lane.b32.xlu0 %v787, 32
        %v790 = vpop.permute.xlu0 %789
        %v792 = vadd.f32 %v781, %v790
        %794 = vrot.lane.b32.xlu0 %v792, 64
        %v795 = vpop.permute.xlu0 %794
        %797 = vst.msk [vmem:[#allocation3] sm:$0xff] %vm686, %v795
        %s798 = scalar_lea.vmem [#allocation2], 8
        %v799 = vld [vmem:[%s798] sm:$0xff]
        %v800 = vsel %vm686, %v795, 0
        %802 = vmatprep.subr.mxu0 0.0
        %803 = vmatpush1.msra.mxu0 %v675
        %804 = vmatprep.subr.mxu0 0.0
        %805 = vmatpush1.msra.mxu0 %v676
        %806 = vmatprep.subr.mxu0 0.0
        %807 = vmatpush1.msra.mxu0 %v677
        %808 = vmatprep.subr.mxu0 0.0
        %809 = vmatpush1.msra.mxu0 %v678
        %810 = vmatprep.subr.mxu0 0.0
        %811 = vmatpush1.msra.mxu0 0.0
        %812 = vmatprep.subr.mxu0 0.0
        %813 = vmatpush1.msra.mxu0 0.0
        %814 = vmatprep.subr.mxu0 0.0
        %815 = vmatpush1.msra.mxu0 0.0
        %816 = vmatprep.subr.mxu0 0.0
        %817 = vmatpush1.msra.mxu0 0.0
        %818 = vmatprep.subr.mxu0 0.0
        %819 = vmatpush1.msra.mxu0 0.0
        %820 = vmatprep.subr.mxu0 0.0
        %821 = vmatpush1.msra.mxu0 0.0
        %822 = vmatprep.subr.mxu0 0.0
        %823 = vmatpush1.msra.mxu0 0.0
        %824 = vmatprep.subr.mxu0 0.0
        %825 = vmatpush1.msra.mxu0 0.0
        %826 = vmatprep.subr.mxu0 0.0
        %827 = vmatpush1.msra.mxu0 0.0
        %828 = vmatprep.subr.mxu0 0.0
        %829 = vmatpush1.msra.mxu0 0.0
        %830 = vmatprep.subr.mxu0 0.0
        %831 = vmatpush1.msra.mxu0 0.0
        %832 = vmatprep.subr.mxu0 0.0
        %833 = vmatpush1.msra.mxu0 0.0
        %834 = vmatprep.subr.mxu0 0.0
        %835 = vmatpush1.msra.mxu0 0.0
        %836 = vmatprep.subr.mxu0 0.0
        %837 = vmatpush1.msra.mxu0 0.0
        %838 = vmatprep.subr.mxu0 0.0
        %839 = vmatpush1.msra.mxu0 0.0
        %840 = vmatprep.subr.mxu0 0.0
        %841 = vmatpush1.msra.mxu0 0.0
        %842 = vmatprep.subr.mxu0 0.0
        %843 = vmatpush1.msra.mxu0 0.0
        %844 = vmatprep.subr.mxu0 0.0
        %845 = vmatpush1.msra.mxu0 0.0
        %846 = vmatprep.subr.mxu0 0.0
        %847 = vmatpush1.msra.mxu0 0.0
        %848 = vmatprep.subr.mxu0 0.0
        %849 = vmatpush1.msra.mxu0 0.0
        %850 = vmatprep.subr.mxu0 0.0
        %851 = vmatpush1.msra.mxu0 0.0
        %852 = vmatprep.subr.mxu0 0.0
        %853 = vmatpush1.msra.mxu0 0.0
        %854 = vmatprep.subr.mxu0 0.0
        %855 = vmatpush1.msra.mxu0 0.0
        %856 = vmatprep.subr.mxu0 0.0
        %857 = vmatpush1.msra.mxu0 0.0
        %858 = vmatprep.subr.mxu0 0.0
        %859 = vmatpush1.msra.mxu0 0.0
        %860 = vmatprep.subr.mxu0 0.0
        %861 = vmatpush1.msra.mxu0 0.0
        %862 = vmatprep.subr.mxu0 0.0
        %863 = vmatpush1.msra.mxu0 0.0
        %864 = vmatprep.subr.mxu0 0.0
        %865 = vmatpush1.msra.mxu0 0.0
        %866 = vmatprep.mubr.f32.mxu0 0.0
        %867 = vmatmul.mubr.f32.gmra.mrb[0].mxu0 %v800
        %v868 = vpop.f32.mrb[0].mxu0
        %v869 = vadd.f32 0.0, %v868
        %v870 = vpop.f32.mrb[0].mxu0
        %871 = vdwg.mxu0
        %v872 = vadd.f32 %v799, %v869
        %v873 = vxor.u32 %v872, 2147483648
        %v874 = vmul.f32 %v873, 1.442695
        %v875 = vpow.pop %v874
        %v876 = vadd.f32 %v875, 1.0
        %v877 = vrcp.pop %v876
        %v878 = vmul.f32 1.0, %v877
        %v879 = vadd.f32 %v869, %v768
        %881 = vrot.lane.b32.xlu0 %v879, 64
        %v882 = vpop.permute.xlu0 %881
        %v884 = vmul.f32 %v878, %v882
        %886 = vrot.lane.b32.xlu0 %v884, 64
        %v887 = vpop.permute.xlu0 %886
        %v889 = vadd.f32 %v799, %v887
        %v890 = vtanh.pop %v889
        %v891 = vsub.f32 %v792, %v890
        %893 = vrot.lane.b32.xlu0 %v891, 96
        %v894 = vpop.permute.xlu0 %893
        %v896 = vmul.f32 %v878, %v894
        %898 = vrot.lane.b32.xlu0 %v896, 32
        %v899 = vpop.permute.xlu0 %898
        %v901 = vadd.f32 %v890, %v899
        %903 = vrot.lane.b32.xlu0 %v901, 64
        %v904 = vpop.permute.xlu0 %903
        %s906 = scalar_lea.vmem [#allocation3], 8
        %907 = vst.msk [vmem:[%s906] sm:$0xff] %vm686, %v904
        %s908 = scalar_lea.vmem [#allocation2], 16
        %v909 = vld [vmem:[%s908] sm:$0xff]
        %v910 = vsel %vm686, %v904, 0
        %912 = vmatprep.subr.mxu0 0.0
        %913 = vmatpush1.msra.mxu0 %v675
        %914 = vmatprep.subr.mxu0 0.0
        %915 = vmatpush1.msra.mxu0 %v676
        %916 = vmatprep.subr.mxu0 0.0
        %917 = vmatpush1.msra.mxu0 %v677
        %918 = vmatprep.subr.mxu0 0.0
        %919 = vmatpush1.msra.mxu0 %v678
        %920 = vmatprep.subr.mxu0 0.0
        %921 = vmatpush1.msra.mxu0 0.0
        %922 = vmatprep.subr.mxu0 0.0
        %923 = vmatpush1.msra.mxu0 0.0
        %924 = vmatprep.subr.mxu0 0.0
        %925 = vmatpush1.msra.mxu0 0.0
        %926 = vmatprep.subr.mxu0 0.0
        %927 = vmatpush1.msra.mxu0 0.0
        %928 = vmatprep.subr.mxu0 0.0
        %929 = vmatpush1.msra.mxu0 0.0
        %930 = vmatprep.subr.mxu0 0.0
        %931 = vmatpush1.msra.mxu0 0.0
        %932 = vmatprep.subr.mxu0 0.0
        %933 = vmatpush1.msra.mxu0 0.0
        %934 = vmatprep.subr.mxu0 0.0
        %935 = vmatpush1.msra.mxu0 0.0
        %936 = vmatprep.subr.mxu0 0.0
        %937 = vmatpush1.msra.mxu0 0.0
        %938 = vmatprep.subr.mxu0 0.0
        %939 = vmatpush1.msra.mxu0 0.0
        %940 = vmatprep.subr.mxu0 0.0
        %941 = vmatpush1.msra.mxu0 0.0
        %942 = vmatprep.subr.mxu0 0.0
        %943 = vmatpush1.msra.mxu0 0.0
        %944 = vmatprep.subr.mxu0 0.0
        %945 = vmatpush1.msra.mxu0 0.0
        %946 = vmatprep.subr.mxu0 0.0
        %947 = vmatpush1.msra.mxu0 0.0
        %948 = vmatprep.subr.mxu0 0.0
        %949 = vmatpush1.msra.mxu0 0.0
        %950 = vmatprep.subr.mxu0 0.0
        %951 = vmatpush1.msra.mxu0 0.0
        %952 = vmatprep.subr.mxu0 0.0
        %953 = vmatpush1.msra.mxu0 0.0
        %954 = vmatprep.subr.mxu0 0.0
        %955 = vmatpush1.msra.mxu0 0.0
        %956 = vmatprep.subr.mxu0 0.0
        %957 = vmatpush1.msra.mxu0 0.0
        %958 = vmatprep.subr.mxu0 0.0
        %959 = vmatpush1.msra.mxu0 0.0
        %960 = vmatprep.subr.mxu0 0.0
        %961 = vmatpush1.msra.mxu0 0.0
        %962 = vmatprep.subr.mxu0 0.0
        %963 = vmatpush1.msra.mxu0 0.0
        %964 = vmatprep.subr.mxu0 0.0
        %965 = vmatpush1.msra.mxu0 0.0
        %966 = vmatprep.subr.mxu0 0.0
        %967 = vmatpush1.msra.mxu0 0.0
        %968 = vmatprep.subr.mxu0 0.0
        %969 = vmatpush1.msra.mxu0 0.0
        %970 = vmatprep.subr.mxu0 0.0
        %971 = vmatpush1.msra.mxu0 0.0
        %972 = vmatprep.subr.mxu0 0.0
        %973 = vmatpush1.msra.mxu0 0.0
        %974 = vmatprep.subr.mxu0 0.0
        %975 = vmatpush1.msra.mxu0 0.0
        %976 = vmatprep.mubr.f32.mxu0 0.0
        %977 = vmatmul.mubr.f32.gmra.mrb[0].mxu0 %v910
        %v978 = vpop.f32.mrb[0].mxu0
        %v979 = vadd.f32 0.0, %v978
        %v980 = vpop.f32.mrb[0].mxu0
        %981 = vdwg.mxu0
        %v982 = vadd.f32 %v909, %v979
        %v983 = vxor.u32 %v982, 2147483648
        %v984 = vmul.f32 %v983, 1.442695
        %v985 = vpow.pop %v984
        %v986 = vadd.f32 %v985, 1.0
        %v987 = vrcp.pop %v986
        %v988 = vmul.f32 1.0, %v987
        %v989 = vadd.f32 %v979, %v768
        %991 = vrot.lane.b32.xlu0 %v989, 64
        %v992 = vpop.permute.xlu0 %991
        %v994 = vmul.f32 %v988, %v992
        %996 = vrot.lane.b32.xlu0 %v994, 64
        %v997 = vpop.permute.xlu0 %996
        %v999 = vadd.f32 %v909, %v997
        %v1000 = vtanh.pop %v999
        %v1001 = vsub.f32 %v901, %v1000
        %1003 = vrot.lane.b32.xlu0 %v1001, 96
        %v1004 = vpop.permute.xlu0 %1003
        %v1006 = vmul.f32 %v988, %v1004
        %1008 = vrot.lane.b32.xlu0 %v1006, 32
        %v1009 = vpop.permute.xlu0 %1008
        %v1011 = vadd.f32 %v1000, %v1009
        %1013 = vrot.lane.b32.xlu0 %v1011, 64
        %v1014 = vpop.permute.xlu0 %1013
        %s1016 = scalar_lea.vmem [#allocation3], 16
        %1017 = vst.msk [vmem:[%s1016] sm:$0xff] %vm686, %v1014
        %s1018 = scalar_lea.vmem [#allocation2], 24
        %v1019 = vld [vmem:[%s1018] sm:$0xff]
        %v1020 = vsel %vm686, %v1014, 0
        %1022 = vmatprep.subr.mxu0 0.0
        %1023 = vmatpush1.msra.mxu0 %v675
        %1024 = vmatprep.subr.mxu0 0.0
        %1025 = vmatpush1.msra.mxu0 %v676
        %1026 = vmatprep.subr.mxu0 0.0
        %1027 = vmatpush1.msra.mxu0 %v677
        %1028 = vmatprep.subr.mxu0 0.0
        %1029 = vmatpush1.msra.mxu0 %v678
        %1030 = vmatprep.subr.mxu0 0.0
        %1031 = vmatpush1.msra.mxu0 0.0
        %1032 = vmatprep.subr.mxu0 0.0
        %1033 = vmatpush1.msra.mxu0 0.0
        %1034 = vmatprep.subr.mxu0 0.0
        %1035 = vmatpush1.msra.mxu0 0.0
        %1036 = vmatprep.subr.mxu0 0.0
        %1037 = vmatpush1.msra.mxu0 0.0
        %1038 = vmatprep.subr.mxu0 0.0
        %1039 = vmatpush1.msra.mxu0 0.0
        %1040 = vmatprep.subr.mxu0 0.0
        %1041 = vmatpush1.msra.mxu0 0.0
        %1042 = vmatprep.subr.mxu0 0.0
        %1043 = vmatpush1.msra.mxu0 0.0
        %1044 = vmatprep.subr.mxu0 0.0
        %1045 = vmatpush1.msra.mxu0 0.0
        %1046 = vmatprep.subr.mxu0 0.0
        %1047 = vmatpush1.msra.mxu0 0.0
        %1048 = vmatprep.subr.mxu0 0.0
        %1049 = vmatpush1.msra.mxu0 0.0
        %1050 = vmatprep.subr.mxu0 0.0
        %1051 = vmatpush1.msra.mxu0 0.0
        %1052 = vmatprep.subr.mxu0 0.0
        %1053 = vmatpush1.msra.mxu0 0.0
        %1054 = vmatprep.subr.mxu0 0.0
        %1055 = vmatpush1.msra.mxu0 0.0
        %1056 = vmatprep.subr.mxu0 0.0
        %1057 = vmatpush1.msra.mxu0 0.0
        %1058 = vmatprep.subr.mxu0 0.0
        %1059 = vmatpush1.msra.mxu0 0.0
        %1060 = vmatprep.subr.mxu0 0.0
        %1061 = vmatpush1.msra.mxu0 0.0
        %1062 = vmatprep.subr.mxu0 0.0
        %1063 = vmatpush1.msra.mxu0 0.0
        %1064 = vmatprep.subr.mxu0 0.0
        %1065 = vmatpush1.msra.mxu0 0.0
        %1066 = vmatprep.subr.mxu0 0.0
        %1067 = vmatpush1.msra.mxu0 0.0
        %1068 = vmatprep.subr.mxu0 0.0
        %1069 = vmatpush1.msra.mxu0 0.0
        %1070 = vmatprep.subr.mxu0 0.0
        %1071 = vmatpush1.msra.mxu0 0.0
        %1072 = vmatprep.subr.mxu0 0.0
        %1073 = vmatpush1.msra.mxu0 0.0
        %1074 = vmatprep.subr.mxu0 0.0
        %1075 = vmatpush1.msra.mxu0 0.0
        %1076 = vmatprep.subr.mxu0 0.0
        %1077 = vmatpush1.msra.mxu0 0.0
        %1078 = vmatprep.subr.mxu0 0.0
        %1079 = vmatpush1.msra.mxu0 0.0
        %1080 = vmatprep.subr.mxu0 0.0
        %1081 = vmatpush1.msra.mxu0 0.0
        %1082 = vmatprep.subr.mxu0 0.0
        %1083 = vmatpush1.msra.mxu0 0.0
        %1084 = vmatprep.subr.mxu0 0.0
        %1085 = vmatpush1.msra.mxu0 0.0
        %1086 = vmatprep.mubr.f32.mxu0 0.0
        %1087 = vmatmul.mubr.f32.gmra.mrb[0].mxu0 %v1020
        %v1088 = vpop.f32.mrb[0].mxu0
        %v1089 = vadd.f32 0.0, %v1088
        %v1090 = vpop.f32.mrb[0].mxu0
        %1091 = vdwg.mxu0
        %v1092 = vadd.f32 %v1019, %v1089
        %v1093 = vxor.u32 %v1092, 2147483648
        %v1094 = vmul.f32 %v1093, 1.442695
        %v1095 = vpow.pop %v1094
        %v1096 = vadd.f32 %v1095, 1.0
        %v1097 = vrcp.pop %v1096
        %v1098 = vmul.f32 1.0, %v1097
        %v1099 = vadd.f32 %v1089, %v768
        %1101 = vrot.lane.b32.xlu0 %v1099, 64
        %v1102 = vpop.permute.xlu0 %1101
        %v1104 = vmul.f32 %v1098, %v1102
        %1106 = vrot.lane.b32.xlu0 %v1104, 64
        %v1107 = vpop.permute.xlu0 %1106
        %v1109 = vadd.f32 %v1019, %v1107
        %v1110 = vtanh.pop %v1109
        %v1111 = vsub.f32 %v1011, %v1110
        %1113 = vrot.lane.b32.xlu0 %v1111, 96
        %v1114 = vpop.permute.xlu0 %1113
        %v1116 = vmul.f32 %v1098, %v1114
        %1118 = vrot.lane.b32.xlu0 %v1116, 32
        %v1119 = vpop.permute.xlu0 %1118
        %v1121 = vadd.f32 %v1110, %v1119
        %1123 = vrot.lane.b32.xlu0 %v1121, 64
        %v1124 = vpop.permute.xlu0 %1123
        %s1126 = scalar_lea.vmem [#allocation3], 24
        %1127 = vst.msk [vmem:[%s1126] sm:$0xff] %vm686, %v1124
        %s1128 = scalar_lea.vmem [#allocation2], 32
        %v1129 = vld [vmem:[%s1128] sm:$0xff]
        %v1130 = vsel %vm686, %v1124, 0
        %1132 = vmatprep.subr.mxu0 0.0
        %1133 = vmatpush1.msra.mxu0 %v675
        %1134 = vmatprep.subr.mxu0 0.0
        %1135 = vmatpush1.msra.mxu0 %v676
        %1136 = vmatprep.subr.mxu0 0.0
        %1137 = vmatpush1.msra.mxu0 %v677
        %1138 = vmatprep.subr.mxu0 0.0
        %1139 = vmatpush1.msra.mxu0 %v678
        %1140 = vmatprep.subr.mxu0 0.0
        %1141 = vmatpush1.msra.mxu0 0.0
        %1142 = vmatprep.subr.mxu0 0.0
        %1143 = vmatpush1.msra.mxu0 0.0
        %1144 = vmatprep.subr.mxu0 0.0
        %1145 = vmatpush1.msra.mxu0 0.0
        %1146 = vmatprep.subr.mxu0 0.0
        %1147 = vmatpush1.msra.mxu0 0.0
        %1148 = vmatprep.subr.mxu0 0.0
        %1149 = vmatpush1.msra.mxu0 0.0
        %1150 = vmatprep.subr.mxu0 0.0
        %1151 = vmatpush1.msra.mxu0 0.0
        %1152 = vmatprep.subr.mxu0 0.0
        %1153 = vmatpush1.msra.mxu0 0.0
        %1154 = vmatprep.subr.mxu0 0.0
        %1155 = vmatpush1.msra.mxu0 0.0
        %1156 = vmatprep.subr.mxu0 0.0
        %1157 = vmatpush1.msra.mxu0 0.0
        %1158 = vmatprep.subr.mxu0 0.0
        %1159 = vmatpush1.msra.mxu0 0.0
        %1160 = vmatprep.subr.mxu0 0.0
        %1161 = vmatpush1.msra.mxu0 0.0
        %1162 = vmatprep.subr.mxu0 0.0
        %1163 = vmatpush1.msra.mxu0 0.0
        %1164 = vmatprep.subr.mxu0 0.0
        %1165 = vmatpush1.msra.mxu0 0.0
        %1166 = vmatprep.subr.mxu0 0.0
        %1167 = vmatpush1.msra.mxu0 0.0
        %1168 = vmatprep.subr.mxu0 0.0
        %1169 = vmatpush1.msra.mxu0 0.0
        %1170 = vmatprep.subr.mxu0 0.0
        %1171 = vmatpush1.msra.mxu0 0.0
        %1172 = vmatprep.subr.mxu0 0.0
        %1173 = vmatpush1.msra.mxu0 0.0
        %1174 = vmatprep.subr.mxu0 0.0
        %1175 = vmatpush1.msra.mxu0 0.0
        %1176 = vmatprep.subr.mxu0 0.0
        %1177 = vmatpush1.msra.mxu0 0.0
        %1178 = vmatprep.subr.mxu0 0.0
        %1179 = vmatpush1.msra.mxu0 0.0
        %1180 = vmatprep.subr.mxu0 0.0
        %1181 = vmatpush1.msra.mxu0 0.0
        %1182 = vmatprep.subr.mxu0 0.0
        %1183 = vmatpush1.msra.mxu0 0.0
        %1184 = vmatprep.subr.mxu0 0.0
        %1185 = vmatpush1.msra.mxu0 0.0
        %1186 = vmatprep.subr.mxu0 0.0
        %1187 = vmatpush1.msra.mxu0 0.0
        %1188 = vmatprep.subr.mxu0 0.0
        %1189 = vmatpush1.msra.mxu0 0.0
        %1190 = vmatprep.subr.mxu0 0.0
        %1191 = vmatpush1.msra.mxu0 0.0
        %1192 = vmatprep.subr.mxu0 0.0
        %1193 = vmatpush1.msra.mxu0 0.0
        %1194 = vmatprep.subr.mxu0 0.0
        %1195 = vmatpush1.msra.mxu0 0.0
        %1196 = vmatprep.mubr.f32.mxu0 0.0
        %1197 = vmatmul.mubr.f32.gmra.mrb[0].mxu0 %v1130
        %v1198 = vpop.f32.mrb[0].mxu0
        %v1199 = vadd.f32 0.0, %v1198
        %v1200 = vpop.f32.mrb[0].mxu0
        %1201 = vdwg.mxu0
        %v1202 = vadd.f32 %v1129, %v1199
        %v1203 = vxor.u32 %v1202, 2147483648
        %v1204 = vmul.f32 %v1203, 1.442695
        %v1205 = vpow.pop %v1204
        %v1206 = vadd.f32 %v1205, 1.0
        %v1207 = vrcp.pop %v1206
        %v1208 = vmul.f32 1.0, %v1207
        %v1209 = vadd.f32 %v1199, %v768
        %1211 = vrot.lane.b32.xlu0 %v1209, 64
        %v1212 = vpop.permute.xlu0 %1211
        %v1214 = vmul.f32 %v1208, %v1212
        %1216 = vrot.lane.b32.xlu0 %v1214, 64
        %v1217 = vpop.permute.xlu0 %1216
        %v1219 = vadd.f32 %v1129, %v1217
        %v1220 = vtanh.pop %v1219
        %v1221 = vsub.f32 %v1121, %v1220
        %1223 = vrot.lane.b32.xlu0 %v1221, 96
        %v1224 = vpop.permute.xlu0 %1223
        %v1226 = vmul.f32 %v1208, %v1224
        %1228 = vrot.lane.b32.xlu0 %v1226, 32
        %v1229 = vpop.permute.xlu0 %1228
        %v1231 = vadd.f32 %v1220, %v1229
        %1233 = vrot.lane.b32.xlu0 %v1231, 64
        %v1234 = vpop.permute.xlu0 %1233
        %s1236 = scalar_lea.vmem [#allocation3], 32
        %1237 = vst.msk [vmem:[%s1236] sm:$0xff] %vm686, %v1234
        %s1238 = scalar_lea.vmem [#allocation2], 40
        %v1239 = vld [vmem:[%s1238] sm:$0xff]
        %v1240 = vsel %vm686, %v1234, 0
        %1242 = vmatprep.subr.mxu0 0.0
        %1243 = vmatpush1.msra.mxu0 %v675
        %1244 = vmatprep.subr.mxu0 0.0
        %1245 = vmatpush1.msra.mxu0 %v676
        %1246 = vmatprep.subr.mxu0 0.0
        %1247 = vmatpush1.msra.mxu0 %v677
        %1248 = vmatprep.subr.mxu0 0.0
        %1249 = vmatpush1.msra.mxu0 %v678
        %1250 = vmatprep.subr.mxu0 0.0
        %1251 = vmatpush1.msra.mxu0 0.0
        %1252 = vmatprep.subr.mxu0 0.0
        %1253 = vmatpush1.msra.mxu0 0.0
        %1254 = vmatprep.subr.mxu0 0.0
        %1255 = vmatpush1.msra.mxu0 0.0
        %1256 = vmatprep.subr.mxu0 0.0
        %1257 = vmatpush1.msra.mxu0 0.0
        %1258 = vmatprep.subr.mxu0 0.0
        %1259 = vmatpush1.msra.mxu0 0.0
        %1260 = vmatprep.subr.mxu0 0.0
        %1261 = vmatpush1.msra.mxu0 0.0
        %1262 = vmatprep.subr.mxu0 0.0
        %1263 = vmatpush1.msra.mxu0 0.0
        %1264 = vmatprep.subr.mxu0 0.0
        %1265 = vmatpush1.msra.mxu0 0.0
        %1266 = vmatprep.subr.mxu0 0.0
        %1267 = vmatpush1.msra.mxu0 0.0
        %1268 = vmatprep.subr.mxu0 0.0
        %1269 = vmatpush1.msra.mxu0 0.0
        %1270 = vmatprep.subr.mxu0 0.0
        %1271 = vmatpush1.msra.mxu0 0.0
        %1272 = vmatprep.subr.mxu0 0.0
        %1273 = vmatpush1.msra.mxu0 0.0
        %1274 = vmatprep.subr.mxu0 0.0
        %1275 = vmatpush1.msra.mxu0 0.0
        %1276 = vmatprep.subr.mxu0 0.0
        %1277 = vmatpush1.msra.mxu0 0.0
        %1278 = vmatprep.subr.mxu0 0.0
        %1279 = vmatpush1.msra.mxu0 0.0
        %1280 = vmatprep.subr.mxu0 0.0
        %1281 = vmatpush1.msra.mxu0 0.0
        %1282 = vmatprep.subr.mxu0 0.0
        %1283 = vmatpush1.msra.mxu0 0.0
        %1284 = vmatprep.subr.mxu0 0.0
        %1285 = vmatpush1.msra.mxu0 0.0
        %1286 = vmatprep.subr.mxu0 0.0
        %1287 = vmatpush1.msra.mxu0 0.0
        %1288 = vmatprep.subr.mxu0 0.0
        %1289 = vmatpush1.msra.mxu0 0.0
        %1290 = vmatprep.subr.mxu0 0.0
        %1291 = vmatpush1.msra.mxu0 0.0
        %1292 = vmatprep.subr.mxu0 0.0
        %1293 = vmatpush1.msra.mxu0 0.0
        %1294 = vmatprep.subr.mxu0 0.0
        %1295 = vmatpush1.msra.mxu0 0.0
        %1296 = vmatprep.subr.mxu0 0.0
        %1297 = vmatpush1.msra.mxu0 0.0
        %1298 = vmatprep.subr.mxu0 0.0
        %1299 = vmatpush1.msra.mxu0 0.0
        %1300 = vmatprep.subr.mxu0 0.0
        %1301 = vmatpush1.msra.mxu0 0.0
        %1302 = vmatprep.subr.mxu0 0.0
        %1303 = vmatpush1.msra.mxu0 0.0
        %1304 = vmatprep.subr.mxu0 0.0
        %1305 = vmatpush1.msra.mxu0 0.0
        %1306 = vmatprep.mubr.f32.mxu0 0.0
        %1307 = vmatmul.mubr.f32.gmra.mrb[0].mxu0 %v1240
        %v1308 = vpop.f32.mrb[0].mxu0
        %v1309 = vadd.f32 0.0, %v1308
        %v1310 = vpop.f32.mrb[0].mxu0
        %1311 = vdwg.mxu0
        %v1312 = vadd.f32 %v1239, %v1309
        %v1313 = vxor.u32 %v1312, 2147483648
        %v1314 = vmul.f32 %v1313, 1.442695
        %v1315 = vpow.pop %v1314
        %v1316 = vadd.f32 %v1315, 1.0
        %v1317 = vrcp.pop %v1316
        %v1318 = vmul.f32 1.0, %v1317
        %v1319 = vadd.f32 %v1309, %v768
        %1321 = vrot.lane.b32.xlu0 %v1319, 64
        %v1322 = vpop.permute.xlu0 %1321
        %v1324 = vmul.f32 %v1318, %v1322
        %1326 = vrot.lane.b32.xlu0 %v1324, 64
        %v1327 = vpop.permute.xlu0 %1326
        %v1329 = vadd.f32 %v1239, %v1327
        %v1330 = vtanh.pop %v1329
        %v1331 = vsub.f32 %v1231, %v1330
        %1333 = vrot.lane.b32.xlu0 %v1331, 96
        %v1334 = vpop.permute.xlu0 %1333
        %v1336 = vmul.f32 %v1318, %v1334
        %1338 = vrot.lane.b32.xlu0 %v1336, 32
        %v1339 = vpop.permute.xlu0 %1338
        %v1341 = vadd.f32 %v1330, %v1339
        %1343 = vrot.lane.b32.xlu0 %v1341, 64
        %v1344 = vpop.permute.xlu0 %1343
        %s1346 = scalar_lea.vmem [#allocation3], 40
        %1347 = vst.msk [vmem:[%s1346] sm:$0xff] %vm686, %v1344
        %s1348 = scalar_lea.vmem [#allocation2], 48
        %v1349 = vld [vmem:[%s1348] sm:$0xff]
        %v1350 = vsel %vm686, %v1344, 0
        %1352 = vmatprep.subr.mxu0 0.0
        %1353 = vmatpush1.msra.mxu0 %v675
        %1354 = vmatprep.subr.mxu0 0.0
        %1355 = vmatpush1.msra.mxu0 %v676
        %1356 = vmatprep.subr.mxu0 0.0
        %1357 = vmatpush1.msra.mxu0 %v677
        %1358 = vmatprep.subr.mxu0 0.0
        %1359 = vmatpush1.msra.mxu0 %v678
        %1360 = vmatprep.subr.mxu0 0.0
        %1361 = vmatpush1.msra.mxu0 0.0
        %1362 = vmatprep.subr.mxu0 0.0
        %1363 = vmatpush1.msra.mxu0 0.0
        %1364 = vmatprep.subr.mxu0 0.0
        %1365 = vmatpush1.msra.mxu0 0.0
        %1366 = vmatprep.subr.mxu0 0.0
        %1367 = vmatpush1.msra.mxu0 0.0
        %1368 = vmatprep.subr.mxu0 0.0
        %1369 = vmatpush1.msra.mxu0 0.0
        %1370 = vmatprep.subr.mxu0 0.0
        %1371 = vmatpush1.msra.mxu0 0.0
        %1372 = vmatprep.subr.mxu0 0.0
        %1373 = vmatpush1.msra.mxu0 0.0
        %1374 = vmatprep.subr.mxu0 0.0
        %1375 = vmatpush1.msra.mxu0 0.0
        %1376 = vmatprep.subr.mxu0 0.0
        %1377 = vmatpush1.msra.mxu0 0.0
        %1378 = vmatprep.subr.mxu0 0.0
        %1379 = vmatpush1.msra.mxu0 0.0
        %1380 = vmatprep.subr.mxu0 0.0
        %1381 = vmatpush1.msra.mxu0 0.0
        %1382 = vmatprep.subr.mxu0 0.0
        %1383 = vmatpush1.msra.mxu0 0.0
        %1384 = vmatprep.subr.mxu0 0.0
        %1385 = vmatpush1.msra.mxu0 0.0
        %1386 = vmatprep.subr.mxu0 0.0
        %1387 = vmatpush1.msra.mxu0 0.0
        %1388 = vmatprep.subr.mxu0 0.0
        %1389 = vmatpush1.msra.mxu0 0.0
        %1390 = vmatprep.subr.mxu0 0.0
        %1391 = vmatpush1.msra.mxu0 0.0
        %1392 = vmatprep.subr.mxu0 0.0
        %1393 = vmatpush1.msra.mxu0 0.0
        %1394 = vmatprep.subr.mxu0 0.0
        %1395 = vmatpush1.msra.mxu0 0.0
        %1396 = vmatprep.subr.mxu0 0.0
        %1397 = vmatpush1.msra.mxu0 0.0
        %1398 = vmatprep.subr.mxu0 0.0
        %1399 = vmatpush1.msra.mxu0 0.0
        %1400 = vmatprep.subr.mxu0 0.0
        %1401 = vmatpush1.msra.mxu0 0.0
        %1402 = vmatprep.subr.mxu0 0.0
        %1403 = vmatpush1.msra.mxu0 0.0
        %1404 = vmatprep.subr.mxu0 0.0
        %1405 = vmatpush1.msra.mxu0 0.0
        %1406 = vmatprep.subr.mxu0 0.0
        %1407 = vmatpush1.msra.mxu0 0.0
        %1408 = vmatprep.subr.mxu0 0.0
        %1409 = vmatpush1.msra.mxu0 0.0
        %1410 = vmatprep.subr.mxu0 0.0
        %1411 = vmatpush1.msra.mxu0 0.0
        %1412 = vmatprep.subr.mxu0 0.0
        %1413 = vmatpush1.msra.mxu0 0.0
        %1414 = vmatprep.subr.mxu0 0.0
        %1415 = vmatpush1.msra.mxu0 0.0
        %1416 = vmatprep.mubr.f32.mxu0 0.0
        %1417 = vmatmul.mubr.f32.gmra.mrb[0].mxu0 %v1350
        %v1418 = vpop.f32.mrb[0].mxu0
        %v1419 = vadd.f32 0.0, %v1418
        %v1420 = vpop.f32.mrb[0].mxu0
        %1421 = vdwg.mxu0
        %v1422 = vadd.f32 %v1349, %v1419
        %v1423 = vxor.u32 %v1422, 2147483648
        %v1424 = vmul.f32 %v1423, 1.442695
        %v1425 = vpow.pop %v1424
        %v1426 = vadd.f32 %v1425, 1.0
        %v1427 = vrcp.pop %v1426
        %v1428 = vmul.f32 1.0, %v1427
        %v1429 = vadd.f32 %v1419, %v768
        %1431 = vrot.lane.b32.xlu0 %v1429, 64
        %v1432 = vpop.permute.xlu0 %1431
        %v1434 = vmul.f32 %v1428, %v1432
        %1436 = vrot.lane.b32.xlu0 %v1434, 64
        %v1437 = vpop.permute.xlu0 %1436
        %v1439 = vadd.f32 %v1349, %v1437
        %v1440 = vtanh.pop %v1439
        %v1441 = vsub.f32 %v1341, %v1440
        %1443 = vrot.lane.b32.xlu0 %v1441, 96
        %v1444 = vpop.permute.xlu0 %1443
        %v1446 = vmul.f32 %v1428, %v1444
        %1448 = vrot.lane.b32.xlu0 %v1446, 32
        %v1449 = vpop.permute.xlu0 %1448
        %v1451 = vadd.f32 %v1440, %v1449
        %1453 = vrot.lane.b32.xlu0 %v1451, 64
        %v1454 = vpop.permute.xlu0 %1453
        %s1456 = scalar_lea.vmem [#allocation3], 48
        %1457 = vst.msk [vmem:[%s1456] sm:$0xff] %vm686, %v1454
        %s1458 = scalar_lea.vmem [#allocation2], 56
        %v1459 = vld [vmem:[%s1458] sm:$0xff]
        %v1460 = vsel %vm686, %v1454, 0
        %1462 = vmatprep.subr.mxu0 0.0
        %1463 = vmatpush1.msra.mxu0 %v675
        %1464 = vmatprep.subr.mxu0 0.0
        %1465 = vmatpush1.msra.mxu0 %v676
        %1466 = vmatprep.subr.mxu0 0.0
        %1467 = vmatpush1.msra.mxu0 %v677
        %1468 = vmatprep.subr.mxu0 0.0
        %1469 = vmatpush1.msra.mxu0 %v678
        %1470 = vmatprep.subr.mxu0 0.0
        %1471 = vmatpush1.msra.mxu0 0.0
        %1472 = vmatprep.subr.mxu0 0.0
        %1473 = vmatpush1.msra.mxu0 0.0
        %1474 = vmatprep.subr.mxu0 0.0
        %1475 = vmatpush1.msra.mxu0 0.0
        %1476 = vmatprep.subr.mxu0 0.0
        %1477 = vmatpush1.msra.mxu0 0.0
        %1478 = vmatprep.subr.mxu0 0.0
        %1479 = vmatpush1.msra.mxu0 0.0
        %1480 = vmatprep.subr.mxu0 0.0
        %1481 = vmatpush1.msra.mxu0 0.0
        %1482 = vmatprep.subr.mxu0 0.0
        %1483 = vmatpush1.msra.mxu0 0.0
        %1484 = vmatprep.subr.mxu0 0.0
        %1485 = vmatpush1.msra.mxu0 0.0
        %1486 = vmatprep.subr.mxu0 0.0
        %1487 = vmatpush1.msra.mxu0 0.0
        %1488 = vmatprep.subr.mxu0 0.0
        %1489 = vmatpush1.msra.mxu0 0.0
        %1490 = vmatprep.subr.mxu0 0.0
        %1491 = vmatpush1.msra.mxu0 0.0
        %1492 = vmatprep.subr.mxu0 0.0
        %1493 = vmatpush1.msra.mxu0 0.0
        %1494 = vmatprep.subr.mxu0 0.0
        %1495 = vmatpush1.msra.mxu0 0.0
        %1496 = vmatprep.subr.mxu0 0.0
        %1497 = vmatpush1.msra.mxu0 0.0
        %1498 = vmatprep.subr.mxu0 0.0
        %1499 = vmatpush1.msra.mxu0 0.0
        %1500 = vmatprep.subr.mxu0 0.0
        %1501 = vmatpush1.msra.mxu0 0.0
        %1502 = vmatprep.subr.mxu0 0.0
        %1503 = vmatpush1.msra.mxu0 0.0
        %1504 = vmatprep.subr.mxu0 0.0
        %1505 = vmatpush1.msra.mxu0 0.0
        %1506 = vmatprep.subr.mxu0 0.0
        %1507 = vmatpush1.msra.mxu0 0.0
        %1508 = vmatprep.subr.mxu0 0.0
        %1509 = vmatpush1.msra.mxu0 0.0
        %1510 = vmatprep.subr.mxu0 0.0
        %1511 = vmatpush1.msra.mxu0 0.0
        %1512 = vmatprep.subr.mxu0 0.0
        %1513 = vmatpush1.msra.mxu0 0.0
        %1514 = vmatprep.subr.mxu0 0.0
        %1515 = vmatpush1.msra.mxu0 0.0
        %1516 = vmatprep.subr.mxu0 0.0
        %1517 = vmatpush1.msra.mxu0 0.0
        %1518 = vmatprep.subr.mxu0 0.0
        %1519 = vmatpush1.msra.mxu0 0.0
        %1520 = vmatprep.subr.mxu0 0.0
        %1521 = vmatpush1.msra.mxu0 0.0
        %1522 = vmatprep.subr.mxu0 0.0
        %1523 = vmatpush1.msra.mxu0 0.0
        %1524 = vmatprep.subr.mxu0 0.0
        %1525 = vmatpush1.msra.mxu0 0.0
        %1526 = vmatprep.mubr.f32.mxu0 0.0
        %1527 = vmatmul.mubr.f32.gmra.mrb[0].mxu0 %v1460
        %v1528 = vpop.f32.mrb[0].mxu0
        %v1529 = vadd.f32 0.0, %v1528
        %v1530 = vpop.f32.mrb[0].mxu0
        %1531 = vdwg.mxu0
        %v1532 = vadd.f32 %v1459, %v1529
        %v1533 = vxor.u32 %v1532, 2147483648
        %v1534 = vmul.f32 %v1533, 1.442695
        %v1535 = vpow.pop %v1534
        %v1536 = vadd.f32 %v1535, 1.0
        %v1537 = vrcp.pop %v1536
        %v1538 = vmul.f32 1.0, %v1537
        %v1539 = vadd.f32 %v1529, %v768
        %1541 = vrot.lane.b32.xlu0 %v1539, 64
        %v1542 = vpop.permute.xlu0 %1541
        %v1544 = vmul.f32 %v1538, %v1542
        %1546 = vrot.lane.b32.xlu0 %v1544, 64
        %v1547 = vpop.permute.xlu0 %1546
        %v1549 = vadd.f32 %v1459, %v1547
        %v1550 = vtanh.pop %v1549
        %v1551 = vsub.f32 %v1451, %v1550
        %1553 = vrot.lane.b32.xlu0 %v1551, 96
        %v1554 = vpop.permute.xlu0 %1553
        %v1556 = vmul.f32 %v1538, %v1554
        %1558 = vrot.lane.b32.xlu0 %v1556, 32
        %v1559 = vpop.permute.xlu0 %1558
        %v1561 = vadd.f32 %v1550, %v1559
        %1563 = vrot.lane.b32.xlu0 %v1561, 64
        %v1564 = vpop.permute.xlu0 %1563
        %s1566 = scalar_lea.vmem [#allocation3], 56
        %1567 = vst.msk [vmem:[%s1566] sm:$0xff] %vm686, %v1564
        %1568 = vst.msk [vmem:[%s371] sm:$0xff] %vm686, %v1564
        %s1569 = sand.u32 %s203, 1
        %s1570 = scalar_lea.sflag [#allocation6], %s1569
        %s1571 = sand.u32 %s203, 1
        %s1572 = smul.addr %s1571, 8
        %s1573 = scalar_lea.vmem [#allocation10], %s1572
        // Predicated region
        $region65: #{tpu_custom_call.1} parent=43 // pred_check
          %p1574 = pneg %p213
        $region66: #{tpu_custom_call.1} parent=43 // pred_check_branch
          %1576 = sbr.rel (%p1574) target = $region68
        $region67: #{tpu_custom_call.1} parent=43 // pred_region
          %s1578 = ssub.s32 128, 128
          %1579 = vsyncadd %s1570, %s1578
          %s1580 = sadd.s32 %s28, %s29
          %s1581 = smul.addr %s1580, 128
          %s1582 = scalar_lea.hbm %s6, %s1581
          %s1584 = sshll.u32 %s1573, 4
          %s1585 = int_to_ptr.vmem [resolvable:$true] %s1584
          %1587 = dma.vmem_to_hbm [thread:$0]  %s1585, 128, %s1582, %s1570
        $region68: #{tpu_custom_call.1} parent=43 // pred_fallthru
          _
      $region44: #{tpu_custom_call.1} parent=5 // pred_fallthru
        _
      %p1588 = scmp.le.s32.totalorder 2, %s19
      // Predicated region
      $region69: #{tpu_custom_call.1} parent=5 // pred_check
        %p1589 = pneg %p1588
      $region70: #{tpu_custom_call.1} parent=5 // pred_check_branch
        %1591 = sbr.rel (%p1589) target = $region72
      $region71: #{tpu_custom_call.1} parent=5 // pred_region
        %s1592 = ssub.s32 %s19, 2
        // Predicated region
        $region73: #{tpu_custom_call.1} parent=71 // pred_check
          %p1593 = pneg %p219
        $region74: #{tpu_custom_call.1} parent=71 // pred_check_branch
          %1595 = sbr.rel (%p1593) target = $region76
        $region75: #{tpu_custom_call.1} parent=71 // pred_region
          %s1596 = sand.u32 %s204, 1
          %s1597 = scalar_lea.sflag [#allocation6], %s1596
          %s1598 = sand.u32 %s204, 1
          %s1599 = smul.addr %s1598, 8
          %s1600 = scalar_lea.vmem [#allocation10], %s1599
          %1601 = dma.done %s1597, 128
        $region76: #{tpu_custom_call.1} parent=71 // pred_fallthru
          _
      $region72: #{tpu_custom_call.1} parent=5 // pred_fallthru
        _
    $region6: #{tpu_custom_call.1} parent=1 // loop_footer
      %s23 = sadd.s32 1, %s19
    $region7: #{tpu_custom_call.1} parent=1 // loop_footer_branch
      %18 = sbr.rel target = $region3
    $region8: #{tpu_custom_call.1} parent=1 // loop_exit
      _
    %1602 = vsyncpa [#allocation5], 1
    %s1603 = scalar_lea.sflag [#allocation5], 1
    %1604 = vsyncpa %s1603, 1
    %1605 = vsyncpa [#allocation8], 1
    %s1606 = scalar_lea.sflag [#allocation8], 1
    %1607 = vsyncpa %s1606, 1
    %1608 = vsyncpa [#allocation6], 1
    %s1609 = scalar_lea.sflag [#allocation6], 1
    %1610 = vsyncpa %s1609, 1

</llo_original>
